<compile_context>
chip_gen: v5e
topology: v5e:2x2
jax: 0.10.0
libtpu: 0.0.40
codegen_flags: <defaults>
</compile_context>

<pallas_src>
import jax
import jax.numpy as jnp
from jax import lax
from jax.experimental import pallas as pl
from jax.experimental.pallas import tpu as pltpu
import numpy as np


def _seq2seq_kernel(src_ref, tgt_ref,                       # SMEM (S,), (T,) int32
                    enc_emb_ref, dec_emb_ref,               # VMEM (Ns,E), (Nt,E) f32
                    e_wih_ref, e_whh_ref, e_b_ref,          # VMEM (E,4H),(H,4H),(1,4H)
                    d_wih_ref, d_whh_ref, d_b_ref,          # VMEM (E,4H),(H,4H),(1,4H)
                    wout_ref, bout_ref,                     # VMEM (H,TN) bf16, (1,TN) f32
                    loss_ref,                               # VMEM (Tp,1) f32 out
                    h_all_ref, m_ref, s_ref, tl_ref):       # VMEM scratch
    H = e_whh_ref.shape[0]
    S = src_ref.shape[0]
    T = tgt_ref.shape[0]
    Tp = h_all_ref.shape[0]
    TN = wout_ref.shape[1]
    v = pl.program_id(0)
    nv = pl.num_programs(0)

    def cell(gates, c):
        # 2 transcendental evals on the full (1,4H) gates vector; PyTorch gate
        # order i,f,g,o.
        sg = jax.nn.sigmoid(gates)
        tg = jnp.tanh(gates)
        i_g = sg[:, 0 * H:1 * H]
        f_g = sg[:, 1 * H:2 * H]
        g_g = tg[:, 2 * H:3 * H]
        o_g = sg[:, 3 * H:4 * H]
        c_new = f_g * c + i_g * g_g
        h_new = o_g * jnp.tanh(c_new)
        return h_new, c_new

    # ---- recurrences + accumulator init: only on the first vocab block ------
    @pl.when(v == 0)
    def _prologue():
        e_wih = e_wih_ref[...]
        e_whh = e_whh_ref[...]
        e_b = e_b_ref[...]
        d_wih = d_wih_ref[...]
        d_whh = d_whh_ref[...]
        d_b = d_b_ref[...]

        # fused embedding gathers (dynamic row slices driven by SMEM ids) and
        # hoisted input->hidden projections (independent of the recurrence,
        # so they sit off the serial h-chain).
        enc_gx = [jnp.dot(enc_emb_ref[pl.ds(src_ref[t], 1), :], e_wih,
                          preferred_element_type=jnp.float32) + e_b
                  for t in range(S)]
        dec_gx = [jnp.dot(dec_emb_ref[pl.ds(tgt_ref[i], 1), :], d_wih,
                          preferred_element_type=jnp.float32) + d_b
                  for i in range(T)]

        # encoder recurrence (unrolled; per step only h @ W_hh is serial)
        h = jnp.zeros((1, H), jnp.float32)
        c = jnp.zeros((1, H), jnp.float32)
        for t in range(S):
            gates = enc_gx[t] + jnp.dot(h, e_whh,
                                        preferred_element_type=jnp.float32)
            h, c = cell(gates, c)

        # hidden = (enc_h, tanh(enc_h)) exactly as the PyTorch forward
        hd = h
        cd = jnp.tanh(h)

        # decoder recurrence; keep h_t rows in vregs, pack into one (Tp,H)
        # slab via sublane-select, single store to scratch.
        row = lax.broadcasted_iota(jnp.int32, (Tp, H), 0)
        slab = jnp.zeros((Tp, H), jnp.float32)
        for i in range(T):
            gates = dec_gx[i] + jnp.dot(hd, d_whh,
                                        preferred_element_type=jnp.float32)
            hd, cd = cell(gates, cd)
            slab = jnp.where(row == i, hd, slab)
        h_all_ref[...] = slab

        m_ref[...] = jnp.full((Tp, 1), -1e30, jnp.float32)
        s_ref[...] = jnp.zeros((Tp, 1), jnp.float32)
        tl_ref[...] = jnp.zeros((Tp, 1), jnp.float32)

    # ---- V-tiled vocab projection + online log-sum-exp (every block) --------
    h_bf = h_all_ref[...].astype(jnp.bfloat16)                       # (Tp,H)
    logits = (jnp.dot(h_bf, wout_ref[...],
                      preferred_element_type=jnp.float32)
              + bout_ref[...])                                       # (Tp,TN) f32
    # padded vocab lanes carry bias -1e30 -> exp underflows to 0 in the LSE.

    m_old = m_ref[...]
    m_new = jnp.maximum(m_old, jnp.max(logits, axis=-1, keepdims=True))
    alpha = jnp.exp(m_old - m_new)
    s_ref[...] = alpha * s_ref[...] + jnp.sum(jnp.exp(logits - m_new),
                                              axis=-1, keepdims=True)
    m_ref[...] = m_new

    # fused target-logit extraction (targets come from SMEM scalars)
    rowc = lax.broadcasted_iota(jnp.int32, (Tp, 1), 0)
    tgt_col = jnp.full((Tp, 1), -1, jnp.int32)        # pad rows never match
    for i in range(T):
        tgt_col = jnp.where(rowc == i, tgt_ref[i], tgt_col)
    lane = lax.broadcasted_iota(jnp.int32, (Tp, TN), 1)
    hit = lane == (tgt_col - v * TN)
    tl_ref[...] = tl_ref[...] + jnp.sum(jnp.where(hit, logits, 0.0),
                                        axis=-1, keepdims=True)

    # ---- finalize the per-step CE loss on the last vocab block --------------
    @pl.when(v == nv - 1)
    def _epilogue():
        loss_ref[...] = (m_ref[...] + jnp.log(s_ref[...])) - tl_ref[...]


def _pick_vocab_tile(vp, tile_v):
    tn = min(tile_v, vp)
    tn = max((tn // 128) * 128, 128)
    while vp % tn != 0:
        tn -= 128
    return tn


def seq2seq_forward(params, source, target, tile_v=2048):
    """Teacher-forced forward of Seq2Seq; returns per-token CE losses (T,)."""
    enc_emb = params["enc_embed"]
    dec_emb = params["dec_embed"]
    e_wih, e_whh, e_b = params["enc_wih_t"], params["enc_whh_t"], params["enc_b"]
    d_wih, d_whh, d_b = params["dec_wih_t"], params["dec_whh_t"], params["dec_b"]
    wout, bout = params["wout_pad"], params["bout_pad"]   # padded once at init

    S = source.shape[0]
    T = target.shape[0]
    H = e_whh.shape[0]
    E = enc_emb.shape[1]
    Vp = wout.shape[1]
    TN = _pick_vocab_tile(Vp, tile_v)
    NV = Vp // TN
    Tp = 8                                   # sublane-aligned staging rows
    assert T <= Tp, "kernel stages decoder states in a single (8,H) slab"

    full = lambda arr: pl.BlockSpec(arr.shape, lambda v, *pref: (0, 0))

    grid_spec = pltpu.PrefetchScalarGridSpec(
        num_scalar_prefetch=2,               # source ids, target ids -> SMEM
        grid=(NV,),
        in_specs=[full(enc_emb), full(dec_emb),
                  full(e_wih), full(e_whh), full(e_b),
                  full(d_wih), full(d_whh), full(d_b),
                  pl.BlockSpec((H, TN), lambda v, *pref: (0, v)),
                  pl.BlockSpec((1, TN), lambda v, *pref: (0, v))],
        out_specs=pl.BlockSpec((Tp, 1), lambda v, *pref: (0, 0)),
        scratch_shapes=[pltpu.VMEM((Tp, H), jnp.float32),   # staged decoder h
                        pltpu.VMEM((Tp, 1), jnp.float32),   # running max
                        pltpu.VMEM((Tp, 1), jnp.float32),   # running sum-exp
                        pltpu.VMEM((Tp, 1), jnp.float32)],  # target logit
    )

    cost = pl.CostEstimate(
        flops=int(2 * Tp * H * Vp + 2 * (S + T) * (E + H) * 4 * H),
        transcendentals=int(Tp * Vp + 6 * 4 * H * (S + T)),
        bytes_accessed=int(wout.size * wout.dtype.itemsize + bout.size * 4
                           + (enc_emb.size + dec_emb.size) * 4
                           + 2 * (E + H) * 4 * H * 2 * 4))

    losses = pl.pallas_call(
        _seq2seq_kernel,
        out_shape=jax.ShapeDtypeStruct((Tp, 1), jnp.float32),
        grid_spec=grid_spec,
        compiler_params=pltpu.CompilerParams(
            dimension_semantics=("arbitrary",)),
        cost_estimate=cost,
    )(source.astype(jnp.int32), target.astype(jnp.int32),
      enc_emb, dec_emb, e_wih, e_whh, e_b, d_wih, d_whh, d_b, wout, bout)
    return losses[:T, 0]                      # (T,)


def _reference_forward(params, source, target):
    """Pure-JAX reference (same bf16 vocab-projection weights as the kernel)."""
    H = params["enc_whh_t"].shape[0]
    V = params["V"]
    wout = params["wout_pad"][:, :V]          # bf16
    bout = params["bout_pad"][:, :V]          # f32

    def lstm_step(x, h, c, wih_t, whh_t, b):
        g = (jnp.dot(x, wih_t, precision=lax.Precision.HIGHEST)
             + jnp.dot(h, whh_t, precision=lax.Precision.HIGHEST) + b)
        i = jax.nn.sigmoid(g[:, 0:H])
        f = jax.nn.sigmoid(g[:, H:2 * H])
        gg = jnp.tanh(g[:, 2 * H:3 * H])
        o = jax.nn.sigmoid(g[:, 3 * H:4 * H])
        c = f * c + i * gg
        h = o * jnp.tanh(c)
        return h, c

    enc_x = params["enc_embed"][source]
    h = jnp.zeros((1, H), jnp.float32)
    c = jnp.zeros((1, H), jnp.float32)
    for t in range(enc_x.shape[0]):
        h, c = lstm_step(enc_x[t:t + 1], h, c,
                         params["enc_wih_t"], params["enc_whh_t"], params["enc_b"])
    hd, cd = h, jnp.tanh(h)
    dec_x = params["dec_embed"][target]
    losses = []
    for i in range(target.shape[0]):
        hd, cd = lstm_step(dec_x[i:i + 1], hd, cd,
                           params["dec_wih_t"], params["dec_whh_t"], params["dec_b"])
        logits = (jnp.dot(hd.astype(jnp.bfloat16), wout,
                          preferred_element_type=jnp.float32) + bout)
        logp = jax.nn.log_softmax(logits, axis=-1)
        losses.append(-logp[0, target[i]])
    return jnp.stack(losses)


def init_params(key, src_nword, trg_nword, embed_dim, hidden_dim):
    ks = jax.random.split(key, 10)
    k = 1.0 / np.sqrt(hidden_dim)
    u = lambda kk, shape, lo, hi: jax.random.uniform(
        kk, shape, jnp.float32, minval=lo, maxval=hi)
    H4 = 4 * hidden_dim
    V = trg_nword
    Vp = ((V + 127) // 128) * 128             # lane-dense vocab pad

    wout = u(ks[8], (hidden_dim, V), -k, k)
    bout = u(ks[9], (1, V), -k, k)
    # Padding + bf16 cast done ONCE here (not per forward call).
    wout_pad = (jnp.zeros((hidden_dim, Vp), jnp.float32)
                .at[:, :V].set(wout).astype(jnp.bfloat16))
    bout_pad = jnp.full((1, Vp), -1e30, jnp.float32).at[:, :V].set(bout)

    return {
        # encoder embedding: nn.init.uniform_(-0.25, 0.25) as in the module
        "enc_embed": u(ks[0], (src_nword, embed_dim), -0.25, 0.25),
        "dec_embed": u(ks[1], (trg_nword, embed_dim), -0.1, 0.1),
        # LSTM weights stored pre-transposed: (in, 4H); bias = b_ih + b_hh
        "enc_wih_t": u(ks[2], (embed_dim, H4), -k, k),
        "enc_whh_t": u(ks[3], (hidden_dim, H4), -k, k),
        "enc_b":     u(ks[4], (1, H4), -k, k),
        "dec_wih_t": u(ks[5], (embed_dim, H4), -k, k),
        "dec_whh_t": u(ks[6], (hidden_dim, H4), -k, k),
        "dec_b":     u(ks[7], (1, H4), -k, k),
        # dec2word: padded bf16 weights / -1e30-padded f32 bias, built once
        "wout_pad":  wout_pad,
        "bout_pad":  bout_pad,
        "V":         V,
    }


if __name__ == "__main__":
    src_nword, trg_nword = 64, 200            # trg vocab > 128 so the V grid has 2 blocks
    embed_dim, hidden_dim = 32, 32
    S, T = 10, 6

    key = jax.random.PRNGKey(0)
    kp, ks_, kt = jax.random.split(key, 3)
    params = init_params(kp, src_nword, trg_nword, embed_dim, hidden_dim)

    source = jax.random.randint(ks_, (S,), 0, src_nword, dtype=jnp.int32)
    target = jax.random.randint(kt, (T,), 0, trg_nword, dtype=jnp.int32)

    losses = seq2seq_forward(params, source, target, tile_v=128)
    losses = jax.block_until_ready(losses)

    ref = _reference_forward(params, source, target)
    # Tolerance covers MXU bf16-pass differences between the in-kernel f32
    # recurrence matmuls and the XLA reference; real bugs produce O(1) errors.
    np.testing.assert_allclose(np.asarray(losses), np.asarray(ref),
                               rtol=1e-2, atol=1e-2)

    print("KERNEL_OK")
</pallas_src>

<mosaic_0001>
module attributes {stable_mosaic.version = 11 : i64} {
  func.func @_seq2seq_kernel(%arg0: i32, %arg1: memref<10xi32, #tpu.memory_space<smem>>, %arg2: memref<6xi32, #tpu.memory_space<smem>>, %arg3: memref<64x32xf32, #tpu.memory_space<vmem>>, %arg4: memref<200x32xf32, #tpu.memory_space<vmem>>, %arg5: memref<32x128xf32, #tpu.memory_space<vmem>>, %arg6: memref<32x128xf32, #tpu.memory_space<vmem>>, %arg7: memref<1x128xf32, #tpu.memory_space<vmem>>, %arg8: memref<32x128xf32, #tpu.memory_space<vmem>>, %arg9: memref<32x128xf32, #tpu.memory_space<vmem>>, %arg10: memref<1x128xf32, #tpu.memory_space<vmem>>, %arg11: memref<32x128xbf16, #tpu.memory_space<vmem>>, %arg12: memref<1x128xf32, #tpu.memory_space<vmem>>, %arg13: memref<8x1xf32, #tpu.memory_space<vmem>>, %arg14: memref<8x32xf32, #tpu.memory_space<vmem>>, %arg15: memref<8x1xf32, #tpu.memory_space<vmem>>, %arg16: memref<8x1xf32, #tpu.memory_space<vmem>>, %arg17: memref<8x1xf32, #tpu.memory_space<vmem>>) attributes {dimension_semantics = [#tpu.dimension_semantics<arbitrary>], iteration_bounds = array<i64: 2>, scalar_prefetch = 2 : i64, scratch_operands = 4 : i64, tpu.core_type = #tpu.core_type<tc>, window_params = [{pipeline_mode = #tpu.pipeline_mode<synchronous>, transform_indices = @transform_0, window_bounds = array<i64: 64, 32>}, {pipeline_mode = #tpu.pipeline_mode<synchronous>, transform_indices = @transform_1, window_bounds = array<i64: 200, 32>}, {pipeline_mode = #tpu.pipeline_mode<synchronous>, transform_indices = @transform_2, window_bounds = array<i64: 32, 128>}, {pipeline_mode = #tpu.pipeline_mode<synchronous>, transform_indices = @transform_3, window_bounds = array<i64: 32, 128>}, {pipeline_mode = #tpu.pipeline_mode<synchronous>, transform_indices = @transform_4, window_bounds = array<i64: 1, 128>}, {pipeline_mode = #tpu.pipeline_mode<synchronous>, transform_indices = @transform_5, window_bounds = array<i64: 32, 128>}, {pipeline_mode = #tpu.pipeline_mode<synchronous>, transform_indices = @transform_6, window_bounds = array<i64: 32, 128>}, {pipeline_mode = #tpu.pipeline_mode<synchronous>, transform_indices = @transform_7, window_bounds = array<i64: 1, 128>}, {transform_indices = @transform_8, window_bounds = array<i64: 32, 128>}, {transform_indices = @transform_9, window_bounds = array<i64: 1, 128>}, {pipeline_mode = #tpu.pipeline_mode<synchronous>, transform_indices = @transform_10, window_bounds = array<i64: 8, 1>}]} {
    %c0_i32 = arith.constant 0 : i32
    %0 = arith.cmpi eq, %arg0, %c0_i32 : i32
    %1 = arith.extui %0 : i1 to i32
    %c0_i32_0 = arith.constant 0 : i32
    %2 = arith.cmpi ne, %1, %c0_i32_0 : i32
    scf.if %2 {
      %c0_26 = arith.constant 0 : index
      %c0_27 = arith.constant 0 : index
      %74 = vector.load %arg5[%c0_26, %c0_27] : memref<32x128xf32, #tpu.memory_space<vmem>>, vector<32x128xf32>
      %c0_28 = arith.constant 0 : index
      %c0_29 = arith.constant 0 : index
      %75 = vector.load %arg6[%c0_28, %c0_29] : memref<32x128xf32, #tpu.memory_space<vmem>>, vector<32x128xf32>
      %c0_30 = arith.constant 0 : index
      %c0_31 = arith.constant 0 : index
      %76 = vector.load %arg7[%c0_30, %c0_31] : memref<1x128xf32, #tpu.memory_space<vmem>>, vector<1x128xf32>
      %c0_32 = arith.constant 0 : index
      %c0_33 = arith.constant 0 : index
      %77 = vector.load %arg8[%c0_32, %c0_33] : memref<32x128xf32, #tpu.memory_space<vmem>>, vector<32x128xf32>
      %c0_34 = arith.constant 0 : index
      %c0_35 = arith.constant 0 : index
      %78 = vector.load %arg9[%c0_34, %c0_35] : memref<32x128xf32, #tpu.memory_space<vmem>>, vector<32x128xf32>
      %c0_36 = arith.constant 0 : index
      %c0_37 = arith.constant 0 : index
      %79 = vector.load %arg10[%c0_36, %c0_37] : memref<1x128xf32, #tpu.memory_space<vmem>>, vector<1x128xf32>
      %c0_38 = arith.constant 0 : index
      %80 = memref.load %arg1[%c0_38] : memref<10xi32, #tpu.memory_space<smem>>
      %81 = arith.index_cast %80 : i32 to index
      %c0_39 = arith.constant 0 : index
      %82 = vector.load %arg3[%81, %c0_39] : memref<64x32xf32, #tpu.memory_space<vmem>>, vector<1x32xf32>
      %cst_40 = arith.constant dense<0.000000e+00> : vector<1x128xf32>
      %83 = tpu.matmul %82, %74, %cst_40 {dimension_numbers = #tpu.dot_dimension_numbers<[1], [0], [0], [1], [0, 0, 1, 1], [], []>} : vector<1x32xf32>, vector<32x128xf32>, vector<1x128xf32> -> vector<1x128xf32>
      %84 = arith.addf %83, %76 : vector<1x128xf32>
      %c1_41 = arith.constant 1 : index
      %85 = memref.load %arg1[%c1_41] : memref<10xi32, #tpu.memory_space<smem>>
      %86 = arith.index_cast %85 : i32 to index
      %c0_42 = arith.constant 0 : index
      %87 = vector.load %arg3[%86, %c0_42] : memref<64x32xf32, #tpu.memory_space<vmem>>, vector<1x32xf32>
      %cst_43 = arith.constant dense<0.000000e+00> : vector<1x128xf32>
      %88 = tpu.matmul %87, %74, %cst_43 {dimension_numbers = #tpu.dot_dimension_numbers<[1], [0], [0], [1], [0, 0, 1, 1], [], []>} : vector<1x32xf32>, vector<32x128xf32>, vector<1x128xf32> -> vector<1x128xf32>
      %89 = arith.addf %88, %76 : vector<1x128xf32>
      %c2_44 = arith.constant 2 : index
      %90 = memref.load %arg1[%c2_44] : memref<10xi32, #tpu.memory_space<smem>>
      %91 = arith.index_cast %90 : i32 to index
      %c0_45 = arith.constant 0 : index
      %92 = vector.load %arg3[%91, %c0_45] : memref<64x32xf32, #tpu.memory_space<vmem>>, vector<1x32xf32>
      %cst_46 = arith.constant dense<0.000000e+00> : vector<1x128xf32>
      %93 = tpu.matmul %92, %74, %cst_46 {dimension_numbers = #tpu.dot_dimension_numbers<[1], [0], [0], [1], [0, 0, 1, 1], [], []>} : vector<1x32xf32>, vector<32x128xf32>, vector<1x128xf32> -> vector<1x128xf32>
      %94 = arith.addf %93, %76 : vector<1x128xf32>
      %c3_47 = arith.constant 3 : index
      %95 = memref.load %arg1[%c3_47] : memref<10xi32, #tpu.memory_space<smem>>
      %96 = arith.index_cast %95 : i32 to index
      %c0_48 = arith.constant 0 : index
      %97 = vector.load %arg3[%96, %c0_48] : memref<64x32xf32, #tpu.memory_space<vmem>>, vector<1x32xf32>
      %cst_49 = arith.constant dense<0.000000e+00> : vector<1x128xf32>
      %98 = tpu.matmul %97, %74, %cst_49 {dimension_numbers = #tpu.dot_dimension_numbers<[1], [0], [0], [1], [0, 0, 1, 1], [], []>} : vector<1x32xf32>, vector<32x128xf32>, vector<1x128xf32> -> vector<1x128xf32>
      %99 = arith.addf %98, %76 : vector<1x128xf32>
      %c4_50 = arith.constant 4 : index
      %100 = memref.load %arg1[%c4_50] : memref<10xi32, #tpu.memory_space<smem>>
      %101 = arith.index_cast %100 : i32 to index
      %c0_51 = arith.constant 0 : index
      %102 = vector.load %arg3[%101, %c0_51] : memref<64x32xf32, #tpu.memory_space<vmem>>, vector<1x32xf32>
      %cst_52 = arith.constant dense<0.000000e+00> : vector<1x128xf32>
      %103 = tpu.matmul %102, %74, %cst_52 {dimension_numbers = #tpu.dot_dimension_numbers<[1], [0], [0], [1], [0, 0, 1, 1], [], []>} : vector<1x32xf32>, vector<32x128xf32>, vector<1x128xf32> -> vector<1x128xf32>
      %104 = arith.addf %103, %76 : vector<1x128xf32>
      %c5_53 = arith.constant 5 : index
      %105 = memref.load %arg1[%c5_53] : memref<10xi32, #tpu.memory_space<smem>>
      %106 = arith.index_cast %105 : i32 to index
      %c0_54 = arith.constant 0 : index
      %107 = vector.load %arg3[%106, %c0_54] : memref<64x32xf32, #tpu.memory_space<vmem>>, vector<1x32xf32>
      %cst_55 = arith.constant dense<0.000000e+00> : vector<1x128xf32>
      %108 = tpu.matmul %107, %74, %cst_55 {dimension_numbers = #tpu.dot_dimension_numbers<[1], [0], [0], [1], [0, 0, 1, 1], [], []>} : vector<1x32xf32>, vector<32x128xf32>, vector<1x128xf32> -> vector<1x128xf32>
      %109 = arith.addf %108, %76 : vector<1x128xf32>
      %c6 = arith.constant 6 : index
      %110 = memref.load %arg1[%c6] : memref<10xi32, #tpu.memory_space<smem>>
      %111 = arith.index_cast %110 : i32 to index
      %c0_56 = arith.constant 0 : index
      %112 = vector.load %arg3[%111, %c0_56] : memref<64x32xf32, #tpu.memory_space<vmem>>, vector<1x32xf32>
      %cst_57 = arith.constant dense<0.000000e+00> : vector<1x128xf32>
      %113 = tpu.matmul %112, %74, %cst_57 {dimension_numbers = #tpu.dot_dimension_numbers<[1], [0], [0], [1], [0, 0, 1, 1], [], []>} : vector<1x32xf32>, vector<32x128xf32>, vector<1x128xf32> -> vector<1x128xf32>
      %114 = arith.addf %113, %76 : vector<1x128xf32>
      %c7 = arith.constant 7 : index
      %115 = memref.load %arg1[%c7] : memref<10xi32, #tpu.memory_space<smem>>
      %116 = arith.index_cast %115 : i32 to index
      %c0_58 = arith.constant 0 : index
      %117 = vector.load %arg3[%116, %c0_58] : memref<64x32xf32, #tpu.memory_space<vmem>>, vector<1x32xf32>
      %cst_59 = arith.constant dense<0.000000e+00> : vector<1x128xf32>
      %118 = tpu.matmul %117, %74, %cst_59 {dimension_numbers = #tpu.dot_dimension_numbers<[1], [0], [0], [1], [0, 0, 1, 1], [], []>} : vector<1x32xf32>, vector<32x128xf32>, vector<1x128xf32> -> vector<1x128xf32>
      %119 = arith.addf %118, %76 : vector<1x128xf32>
      %c8 = arith.constant 8 : index
      %120 = memref.load %arg1[%c8] : memref<10xi32, #tpu.memory_space<smem>>
      %121 = arith.index_cast %120 : i32 to index
      %c0_60 = arith.constant 0 : index
      %122 = vector.load %arg3[%121, %c0_60] : memref<64x32xf32, #tpu.memory_space<vmem>>, vector<1x32xf32>
      %cst_61 = arith.constant dense<0.000000e+00> : vector<1x128xf32>
      %123 = tpu.matmul %122, %74, %cst_61 {dimension_numbers = #tpu.dot_dimension_numbers<[1], [0], [0], [1], [0, 0, 1, 1], [], []>} : vector<1x32xf32>, vector<32x128xf32>, vector<1x128xf32> -> vector<1x128xf32>
      %124 = arith.addf %123, %76 : vector<1x128xf32>
      %c9 = arith.constant 9 : index
      %125 = memref.load %arg1[%c9] : memref<10xi32, #tpu.memory_space<smem>>
      %126 = arith.index_cast %125 : i32 to index
      %c0_62 = arith.constant 0 : index
      %127 = vector.load %arg3[%126, %c0_62] : memref<64x32xf32, #tpu.memory_space<vmem>>, vector<1x32xf32>
      %cst_63 = arith.constant dense<0.000000e+00> : vector<1x128xf32>
      %128 = tpu.matmul %127, %74, %cst_63 {dimension_numbers = #tpu.dot_dimension_numbers<[1], [0], [0], [1], [0, 0, 1, 1], [], []>} : vector<1x32xf32>, vector<32x128xf32>, vector<1x128xf32> -> vector<1x128xf32>
      %129 = arith.addf %128, %76 : vector<1x128xf32>
      %c0_64 = arith.constant 0 : index
      %130 = memref.load %arg2[%c0_64] : memref<6xi32, #tpu.memory_space<smem>>
      %131 = arith.index_cast %130 : i32 to index
      %c0_65 = arith.constant 0 : index
      %132 = vector.load %arg4[%131, %c0_65] : memref<200x32xf32, #tpu.memory_space<vmem>>, vector<1x32xf32>
      %cst_66 = arith.constant dense<0.000000e+00> : vector<1x128xf32>
      %133 = tpu.matmul %132, %77, %cst_66 {dimension_numbers = #tpu.dot_dimension_numbers<[1], [0], [0], [1], [0, 0, 1, 1], [], []>} : vector<1x32xf32>, vector<32x128xf32>, vector<1x128xf32> -> vector<1x128xf32>
      %134 = arith.addf %133, %79 : vector<1x128xf32>
      %c1_67 = arith.constant 1 : index
      %135 = memref.load %arg2[%c1_67] : memref<6xi32, #tpu.memory_space<smem>>
      %136 = arith.index_cast %135 : i32 to index
      %c0_68 = arith.constant 0 : index
      %137 = vector.load %arg4[%136, %c0_68] : memref<200x32xf32, #tpu.memory_space<vmem>>, vector<1x32xf32>
      %cst_69 = arith.constant dense<0.000000e+00> : vector<1x128xf32>
      %138 = tpu.matmul %137, %77, %cst_69 {dimension_numbers = #tpu.dot_dimension_numbers<[1], [0], [0], [1], [0, 0, 1, 1], [], []>} : vector<1x32xf32>, vector<32x128xf32>, vector<1x128xf32> -> vector<1x128xf32>
      %139 = arith.addf %138, %79 : vector<1x128xf32>
      %c2_70 = arith.constant 2 : index
      %140 = memref.load %arg2[%c2_70] : memref<6xi32, #tpu.memory_space<smem>>
      %141 = arith.index_cast %140 : i32 to index
      %c0_71 = arith.constant 0 : index
      %142 = vector.load %arg4[%141, %c0_71] : memref<200x32xf32, #tpu.memory_space<vmem>>, vector<1x32xf32>
      %cst_72 = arith.constant dense<0.000000e+00> : vector<1x128xf32>
      %143 = tpu.matmul %142, %77, %cst_72 {dimension_numbers = #tpu.dot_dimension_numbers<[1], [0], [0], [1], [0, 0, 1, 1], [], []>} : vector<1x32xf32>, vector<32x128xf32>, vector<1x128xf32> -> vector<1x128xf32>
      %144 = arith.addf %143, %79 : vector<1x128xf32>
      %c3_73 = arith.constant 3 : index
      %145 = memref.load %arg2[%c3_73] : memref<6xi32, #tpu.memory_space<smem>>
      %146 = arith.index_cast %145 : i32 to index
      %c0_74 = arith.constant 0 : index
      %147 = vector.load %arg4[%146, %c0_74] : memref<200x32xf32, #tpu.memory_space<vmem>>, vector<1x32xf32>
      %cst_75 = arith.constant dense<0.000000e+00> : vector<1x128xf32>
      %148 = tpu.matmul %147, %77, %cst_75 {dimension_numbers = #tpu.dot_dimension_numbers<[1], [0], [0], [1], [0, 0, 1, 1], [], []>} : vector<1x32xf32>, vector<32x128xf32>, vector<1x128xf32> -> vector<1x128xf32>
      %149 = arith.addf %148, %79 : vector<1x128xf32>
      %c4_76 = arith.constant 4 : index
      %150 = memref.load %arg2[%c4_76] : memref<6xi32, #tpu.memory_space<smem>>
      %151 = arith.index_cast %150 : i32 to index
      %c0_77 = arith.constant 0 : index
      %152 = vector.load %arg4[%151, %c0_77] : memref<200x32xf32, #tpu.memory_space<vmem>>, vector<1x32xf32>
      %cst_78 = arith.constant dense<0.000000e+00> : vector<1x128xf32>
      %153 = tpu.matmul %152, %77, %cst_78 {dimension_numbers = #tpu.dot_dimension_numbers<[1], [0], [0], [1], [0, 0, 1, 1], [], []>} : vector<1x32xf32>, vector<32x128xf32>, vector<1x128xf32> -> vector<1x128xf32>
      %154 = arith.addf %153, %79 : vector<1x128xf32>
      %c5_79 = arith.constant 5 : index
      %155 = memref.load %arg2[%c5_79] : memref<6xi32, #tpu.memory_space<smem>>
      %156 = arith.index_cast %155 : i32 to index
      %c0_80 = arith.constant 0 : index
      %157 = vector.load %arg4[%156, %c0_80] : memref<200x32xf32, #tpu.memory_space<vmem>>, vector<1x32xf32>
      %cst_81 = arith.constant dense<0.000000e+00> : vector<1x128xf32>
      %158 = tpu.matmul %157, %77, %cst_81 {dimension_numbers = #tpu.dot_dimension_numbers<[1], [0], [0], [1], [0, 0, 1, 1], [], []>} : vector<1x32xf32>, vector<32x128xf32>, vector<1x128xf32> -> vector<1x128xf32>
      %159 = arith.addf %158, %79 : vector<1x128xf32>
      %cst_82 = arith.constant 0.000000e+00 : f32
      %160 = vector.broadcast %cst_82 : f32 to vector<1x32xf32>
      %cst_83 = arith.constant 0.000000e+00 : f32
      %161 = vector.broadcast %cst_83 : f32 to vector<1x32xf32>
      %cst_84 = arith.constant dense<0.000000e+00> : vector<1x128xf32>
      %162 = tpu.matmul %160, %75, %cst_84 {dimension_numbers = #tpu.dot_dimension_numbers<[1], [0], [0], [1], [0, 0, 1, 1], [], []>} : vector<1x32xf32>, vector<32x128xf32>, vector<1x128xf32> -> vector<1x128xf32>
      %163 = arith.addf %84, %162 : vector<1x128xf32>
      %164 = arith.negf %163 : vector<1x128xf32>
      %165 = math.exp %164 : vector<1x128xf32>
      %cst_85 = arith.constant 1.000000e+00 : f32
      %166 = vector.broadcast %cst_85 : f32 to vector<1x128xf32>
      %167 = arith.addf %166, %165 : vector<1x128xf32>
      %168 = arith.divf %166, %167 : vector<1x128xf32>
      %169 = math.tanh %163 : vector<1x128xf32>
      %170 = vector.extract_strided_slice %168 {offsets = [0, 0], sizes = [1, 32], strides = [1, 1]} : vector<1x128xf32> to vector<1x32xf32>
      %171 = vector.extract_strided_slice %168 {offsets = [0, 32], sizes = [1, 32], strides = [1, 1]} : vector<1x128xf32> to vector<1x32xf32>
      %172 = vector.extract_strided_slice %169 {offsets = [0, 64], sizes = [1, 32], strides = [1, 1]} : vector<1x128xf32> to vector<1x32xf32>
      %173 = vector.extract_strided_slice %168 {offsets = [0, 96], sizes = [1, 32], strides = [1, 1]} : vector<1x128xf32> to vector<1x32xf32>
      %174 = arith.mulf %171, %161 : vector<1x32xf32>
      %175 = arith.mulf %170, %172 : vector<1x32xf32>
      %176 = arith.addf %174, %175 : vector<1x32xf32>
      %177 = math.tanh %176 : vector<1x32xf32>
      %178 = arith.mulf %173, %177 : vector<1x32xf32>
      %cst_86 = arith.constant dense<0.000000e+00> : vector<1x128xf32>
      %179 = tpu.matmul %178, %75, %cst_86 {dimension_numbers = #tpu.dot_dimension_numbers<[1], [0], [0], [1], [0, 0, 1, 1], [], []>} : vector<1x32xf32>, vector<32x128xf32>, vector<1x128xf32> -> vector<1x128xf32>
      %180 = arith.addf %89, %179 : vector<1x128xf32>
      %181 = arith.negf %180 : vector<1x128xf32>
      %182 = math.exp %181 : vector<1x128xf32>
      %cst_87 = arith.constant 1.000000e+00 : f32
      %183 = vector.broadcast %cst_87 : f32 to vector<1x128xf32>
      %184 = arith.addf %183, %182 : vector<1x128xf32>
      %185 = arith.divf %183, %184 : vector<1x128xf32>
      %186 = math.tanh %180 : vector<1x128xf32>
      %187 = vector.extract_strided_slice %185 {offsets = [0, 0], sizes = [1, 32], strides = [1, 1]} : vector<1x128xf32> to vector<1x32xf32>
      %188 = vector.extract_strided_slice %185 {offsets = [0, 32], sizes = [1, 32], strides = [1, 1]} : vector<1x128xf32> to vector<1x32xf32>
      %189 = vector.extract_strided_slice %186 {offsets = [0, 64], sizes = [1, 32], strides = [1, 1]} : vector<1x128xf32> to vector<1x32xf32>
      %190 = vector.extract_strided_slice %185 {offsets = [0, 96], sizes = [1, 32], strides = [1, 1]} : vector<1x128xf32> to vector<1x32xf32>
      %191 = arith.mulf %188, %176 : vector<1x32xf32>
      %192 = arith.mulf %187, %189 : vector<1x32xf32>
      %193 = arith.addf %191, %192 : vector<1x32xf32>
      %194 = math.tanh %193 : vector<1x32xf32>
      %195 = arith.mulf %190, %194 : vector<1x32xf32>
      %cst_88 = arith.constant dense<0.000000e+00> : vector<1x128xf32>
      %196 = tpu.matmul %195, %75, %cst_88 {dimension_numbers = #tpu.dot_dimension_numbers<[1], [0], [0], [1], [0, 0, 1, 1], [], []>} : vector<1x32xf32>, vector<32x128xf32>, vector<1x128xf32> -> vector<1x128xf32>
      %197 = arith.addf %94, %196 : vector<1x128xf32>
      %198 = arith.negf %197 : vector<1x128xf32>
      %199 = math.exp %198 : vector<1x128xf32>
      %cst_89 = arith.constant 1.000000e+00 : f32
      %200 = vector.broadcast %cst_89 : f32 to vector<1x128xf32>
      %201 = arith.addf %200, %199 : vector<1x128xf32>
      %202 = arith.divf %200, %201 : vector<1x128xf32>
      %203 = math.tanh %197 : vector<1x128xf32>
      %204 = vector.extract_strided_slice %202 {offsets = [0, 0], sizes = [1, 32], strides = [1, 1]} : vector<1x128xf32> to vector<1x32xf32>
      %205 = vector.extract_strided_slice %202 {offsets = [0, 32], sizes = [1, 32], strides = [1, 1]} : vector<1x128xf32> to vector<1x32xf32>
      %206 = vector.extract_strided_slice %203 {offsets = [0, 64], sizes = [1, 32], strides = [1, 1]} : vector<1x128xf32> to vector<1x32xf32>
      %207 = vector.extract_strided_slice %202 {offsets = [0, 96], sizes = [1, 32], strides = [1, 1]} : vector<1x128xf32> to vector<1x32xf32>
      %208 = arith.mulf %205, %193 : vector<1x32xf32>
      %209 = arith.mulf %204, %206 : vector<1x32xf32>
      %210 = arith.addf %208, %209 : vector<1x32xf32>
      %211 = math.tanh %210 : vector<1x32xf32>
      %212 = arith.mulf %207, %211 : vector<1x32xf32>
      %cst_90 = arith.constant dense<0.000000e+00> : vector<1x128xf32>
      %213 = tpu.matmul %212, %75, %cst_90 {dimension_numbers = #tpu.dot_dimension_numbers<[1], [0], [0], [1], [0, 0, 1, 1], [], []>} : vector<1x32xf32>, vector<32x128xf32>, vector<1x128xf32> -> vector<1x128xf32>
      %214 = arith.addf %99, %213 : vector<1x128xf32>
      %215 = arith.negf %214 : vector<1x128xf32>
      %216 = math.exp %215 : vector<1x128xf32>
      %cst_91 = arith.constant 1.000000e+00 : f32
      %217 = vector.broadcast %cst_91 : f32 to vector<1x128xf32>
      %218 = arith.addf %217, %216 : vector<1x128xf32>
      %219 = arith.divf %217, %218 : vector<1x128xf32>
      %220 = math.tanh %214 : vector<1x128xf32>
      %221 = vector.extract_strided_slice %219 {offsets = [0, 0], sizes = [1, 32], strides = [1, 1]} : vector<1x128xf32> to vector<1x32xf32>
      %222 = vector.extract_strided_slice %219 {offsets = [0, 32], sizes = [1, 32], strides = [1, 1]} : vector<1x128xf32> to vector<1x32xf32>
      %223 = vector.extract_strided_slice %220 {offsets = [0, 64], sizes = [1, 32], strides = [1, 1]} : vector<1x128xf32> to vector<1x32xf32>
      %224 = vector.extract_strided_slice %219 {offsets = [0, 96], sizes = [1, 32], strides = [1, 1]} : vector<1x128xf32> to vector<1x32xf32>
      %225 = arith.mulf %222, %210 : vector<1x32xf32>
      %226 = arith.mulf %221, %223 : vector<1x32xf32>
      %227 = arith.addf %225, %226 : vector<1x32xf32>
      %228 = math.tanh %227 : vector<1x32xf32>
      %229 = arith.mulf %224, %228 : vector<1x32xf32>
      %cst_92 = arith.constant dense<0.000000e+00> : vector<1x128xf32>
      %230 = tpu.matmul %229, %75, %cst_92 {dimension_numbers = #tpu.dot_dimension_numbers<[1], [0], [0], [1], [0, 0, 1, 1], [], []>} : vector<1x32xf32>, vector<32x128xf32>, vector<1x128xf32> -> vector<1x128xf32>
      %231 = arith.addf %104, %230 : vector<1x128xf32>
      %232 = arith.negf %231 : vector<1x128xf32>
      %233 = math.exp %232 : vector<1x128xf32>
      %cst_93 = arith.constant 1.000000e+00 : f32
      %234 = vector.broadcast %cst_93 : f32 to vector<1x128xf32>
      %235 = arith.addf %234, %233 : vector<1x128xf32>
      %236 = arith.divf %234, %235 : vector<1x128xf32>
      %237 = math.tanh %231 : vector<1x128xf32>
      %238 = vector.extract_strided_slice %236 {offsets = [0, 0], sizes = [1, 32], strides = [1, 1]} : vector<1x128xf32> to vector<1x32xf32>
      %239 = vector.extract_strided_slice %236 {offsets = [0, 32], sizes = [1, 32], strides = [1, 1]} : vector<1x128xf32> to vector<1x32xf32>
      %240 = vector.extract_strided_slice %237 {offsets = [0, 64], sizes = [1, 32], strides = [1, 1]} : vector<1x128xf32> to vector<1x32xf32>
      %241 = vector.extract_strided_slice %236 {offsets = [0, 96], sizes = [1, 32], strides = [1, 1]} : vector<1x128xf32> to vector<1x32xf32>
      %242 = arith.mulf %239, %227 : vector<1x32xf32>
      %243 = arith.mulf %238, %240 : vector<1x32xf32>
      %244 = arith.addf %242, %243 : vector<1x32xf32>
      %245 = math.tanh %244 : vector<1x32xf32>
      %246 = arith.mulf %241, %245 : vector<1x32xf32>
      %cst_94 = arith.constant dense<0.000000e+00> : vector<1x128xf32>
      %247 = tpu.matmul %246, %75, %cst_94 {dimension_numbers = #tpu.dot_dimension_numbers<[1], [0], [0], [1], [0, 0, 1, 1], [], []>} : vector<1x32xf32>, vector<32x128xf32>, vector<1x128xf32> -> vector<1x128xf32>
      %248 = arith.addf %109, %247 : vector<1x128xf32>
      %249 = arith.negf %248 : vector<1x128xf32>
      %250 = math.exp %249 : vector<1x128xf32>
      %cst_95 = arith.constant 1.000000e+00 : f32
      %251 = vector.broadcast %cst_95 : f32 to vector<1x128xf32>
      %252 = arith.addf %251, %250 : vector<1x128xf32>
      %253 = arith.divf %251, %252 : vector<1x128xf32>
      %254 = math.tanh %248 : vector<1x128xf32>
      %255 = vector.extract_strided_slice %253 {offsets = [0, 0], sizes = [1, 32], strides = [1, 1]} : vector<1x128xf32> to vector<1x32xf32>
      %256 = vector.extract_strided_slice %253 {offsets = [0, 32], sizes = [1, 32], strides = [1, 1]} : vector<1x128xf32> to vector<1x32xf32>
      %257 = vector.extract_strided_slice %254 {offsets = [0, 64], sizes = [1, 32], strides = [1, 1]} : vector<1x128xf32> to vector<1x32xf32>
      %258 = vector.extract_strided_slice %253 {offsets = [0, 96], sizes = [1, 32], strides = [1, 1]} : vector<1x128xf32> to vector<1x32xf32>
      %259 = arith.mulf %256, %244 : vector<1x32xf32>
      %260 = arith.mulf %255, %257 : vector<1x32xf32>
      %261 = arith.addf %259, %260 : vector<1x32xf32>
      %262 = math.tanh %261 : vector<1x32xf32>
      %263 = arith.mulf %258, %262 : vector<1x32xf32>
      %cst_96 = arith.constant dense<0.000000e+00> : vector<1x128xf32>
      %264 = tpu.matmul %263, %75, %cst_96 {dimension_numbers = #tpu.dot_dimension_numbers<[1], [0], [0], [1], [0, 0, 1, 1], [], []>} : vector<1x32xf32>, vector<32x128xf32>, vector<1x128xf32> -> vector<1x128xf32>
      %265 = arith.addf %114, %264 : vector<1x128xf32>
      %266 = arith.negf %265 : vector<1x128xf32>
      %267 = math.exp %266 : vector<1x128xf32>
      %cst_97 = arith.constant 1.000000e+00 : f32
      %268 = vector.broadcast %cst_97 : f32 to vector<1x128xf32>
      %269 = arith.addf %268, %267 : vector<1x128xf32>
      %270 = arith.divf %268, %269 : vector<1x128xf32>
      %271 = math.tanh %265 : vector<1x128xf32>
      %272 = vector.extract_strided_slice %270 {offsets = [0, 0], sizes = [1, 32], strides = [1, 1]} : vector<1x128xf32> to vector<1x32xf32>
      %273 = vector.extract_strided_slice %270 {offsets = [0, 32], sizes = [1, 32], strides = [1, 1]} : vector<1x128xf32> to vector<1x32xf32>
      %274 = vector.extract_strided_slice %271 {offsets = [0, 64], sizes = [1, 32], strides = [1, 1]} : vector<1x128xf32> to vector<1x32xf32>
      %275 = vector.extract_strided_slice %270 {offsets = [0, 96], sizes = [1, 32], strides = [1, 1]} : vector<1x128xf32> to vector<1x32xf32>
      %276 = arith.mulf %273, %261 : vector<1x32xf32>
      %277 = arith.mulf %272, %274 : vector<1x32xf32>
      %278 = arith.addf %276, %277 : vector<1x32xf32>
      %279 = math.tanh %278 : vector<1x32xf32>
      %280 = arith.mulf %275, %279 : vector<1x32xf32>
      %cst_98 = arith.constant dense<0.000000e+00> : vector<1x128xf32>
      %281 = tpu.matmul %280, %75, %cst_98 {dimension_numbers = #tpu.dot_dimension_numbers<[1], [0], [0], [1], [0, 0, 1, 1], [], []>} : vector<1x32xf32>, vector<32x128xf32>, vector<1x128xf32> -> vector<1x128xf32>
      %282 = arith.addf %119, %281 : vector<1x128xf32>
      %283 = arith.negf %282 : vector<1x128xf32>
      %284 = math.exp %283 : vector<1x128xf32>
      %cst_99 = arith.constant 1.000000e+00 : f32
      %285 = vector.broadcast %cst_99 : f32 to vector<1x128xf32>
      %286 = arith.addf %285, %284 : vector<1x128xf32>
      %287 = arith.divf %285, %286 : vector<1x128xf32>
      %288 = math.tanh %282 : vector<1x128xf32>
      %289 = vector.extract_strided_slice %287 {offsets = [0, 0], sizes = [1, 32], strides = [1, 1]} : vector<1x128xf32> to vector<1x32xf32>
      %290 = vector.extract_strided_slice %287 {offsets = [0, 32], sizes = [1, 32], strides = [1, 1]} : vector<1x128xf32> to vector<1x32xf32>
      %291 = vector.extract_strided_slice %288 {offsets = [0, 64], sizes = [1, 32], strides = [1, 1]} : vector<1x128xf32> to vector<1x32xf32>
      %292 = vector.extract_strided_slice %287 {offsets = [0, 96], sizes = [1, 32], strides = [1, 1]} : vector<1x128xf32> to vector<1x32xf32>
      %293 = arith.mulf %290, %278 : vector<1x32xf32>
      %294 = arith.mulf %289, %291 : vector<1x32xf32>
      %295 = arith.addf %293, %294 : vector<1x32xf32>
      %296 = math.tanh %295 : vector<1x32xf32>
      %297 = arith.mulf %292, %296 : vector<1x32xf32>
      %cst_100 = arith.constant dense<0.000000e+00> : vector<1x128xf32>
      %298 = tpu.matmul %297, %75, %cst_100 {dimension_numbers = #tpu.dot_dimension_numbers<[1], [0], [0], [1], [0, 0, 1, 1], [], []>} : vector<1x32xf32>, vector<32x128xf32>, vector<1x128xf32> -> vector<1x128xf32>
      %299 = arith.addf %124, %298 : vector<1x128xf32>
      %300 = arith.negf %299 : vector<1x128xf32>
      %301 = math.exp %300 : vector<1x128xf32>
      %cst_101 = arith.constant 1.000000e+00 : f32
      %302 = vector.broadcast %cst_101 : f32 to vector<1x128xf32>
      %303 = arith.addf %302, %301 : vector<1x128xf32>
      %304 = arith.divf %302, %303 : vector<1x128xf32>
      %305 = math.tanh %299 : vector<1x128xf32>
      %306 = vector.extract_strided_slice %304 {offsets = [0, 0], sizes = [1, 32], strides = [1, 1]} : vector<1x128xf32> to vector<1x32xf32>
      %307 = vector.extract_strided_slice %304 {offsets = [0, 32], sizes = [1, 32], strides = [1, 1]} : vector<1x128xf32> to vector<1x32xf32>
      %308 = vector.extract_strided_slice %305 {offsets = [0, 64], sizes = [1, 32], strides = [1, 1]} : vector<1x128xf32> to vector<1x32xf32>
      %309 = vector.extract_strided_slice %304 {offsets = [0, 96], sizes = [1, 32], strides = [1, 1]} : vector<1x128xf32> to vector<1x32xf32>
      %310 = arith.mulf %307, %295 : vector<1x32xf32>
      %311 = arith.mulf %306, %308 : vector<1x32xf32>
      %312 = arith.addf %310, %311 : vector<1x32xf32>
      %313 = math.tanh %312 : vector<1x32xf32>
      %314 = arith.mulf %309, %313 : vector<1x32xf32>
      %cst_102 = arith.constant dense<0.000000e+00> : vector<1x128xf32>
      %315 = tpu.matmul %314, %75, %cst_102 {dimension_numbers = #tpu.dot_dimension_numbers<[1], [0], [0], [1], [0, 0, 1, 1], [], []>} : vector<1x32xf32>, vector<32x128xf32>, vector<1x128xf32> -> vector<1x128xf32>
      %316 = arith.addf %129, %315 : vector<1x128xf32>
      %317 = arith.negf %316 : vector<1x128xf32>
      %318 = math.exp %317 : vector<1x128xf32>
      %cst_103 = arith.constant 1.000000e+00 : f32
      %319 = vector.broadcast %cst_103 : f32 to vector<1x128xf32>
      %320 = arith.addf %319, %318 : vector<1x128xf32>
      %321 = arith.divf %319, %320 : vector<1x128xf32>
      %322 = math.tanh %316 : vector<1x128xf32>
      %323 = vector.extract_strided_slice %321 {offsets = [0, 0], sizes = [1, 32], strides = [1, 1]} : vector<1x128xf32> to vector<1x32xf32>
      %324 = vector.extract_strided_slice %321 {offsets = [0, 32], sizes = [1, 32], strides = [1, 1]} : vector<1x128xf32> to vector<1x32xf32>
      %325 = vector.extract_strided_slice %322 {offsets = [0, 64], sizes = [1, 32], strides = [1, 1]} : vector<1x128xf32> to vector<1x32xf32>
      %326 = vector.extract_strided_slice %321 {offsets = [0, 96], sizes = [1, 32], strides = [1, 1]} : vector<1x128xf32> to vector<1x32xf32>
      %327 = arith.mulf %324, %312 : vector<1x32xf32>
      %328 = arith.mulf %323, %325 : vector<1x32xf32>
      %329 = arith.addf %327, %328 : vector<1x32xf32>
      %330 = math.tanh %329 : vector<1x32xf32>
      %331 = arith.mulf %326, %330 : vector<1x32xf32>
      %332 = math.tanh %331 : vector<1x32xf32>
      %333 = tpu.iota {dimensions = array<i32: 0>} : vector<8x32xi32>
      %cst_104 = arith.constant 0.000000e+00 : f32
      %334 = vector.broadcast %cst_104 : f32 to vector<8x32xf32>
      %cst_105 = arith.constant dense<0.000000e+00> : vector<1x128xf32>
      %335 = tpu.matmul %331, %78, %cst_105 {dimension_numbers = #tpu.dot_dimension_numbers<[1], [0], [0], [1], [0, 0, 1, 1], [], []>} : vector<1x32xf32>, vector<32x128xf32>, vector<1x128xf32> -> vector<1x128xf32>
      %336 = arith.addf %134, %335 : vector<1x128xf32>
      %337 = arith.negf %336 : vector<1x128xf32>
      %338 = math.exp %337 : vector<1x128xf32>
      %cst_106 = arith.constant 1.000000e+00 : f32
      %339 = vector.broadcast %cst_106 : f32 to vector<1x128xf32>
      %340 = arith.addf %339, %338 : vector<1x128xf32>
      %341 = arith.divf %339, %340 : vector<1x128xf32>
      %342 = math.tanh %336 : vector<1x128xf32>
      %343 = vector.extract_strided_slice %341 {offsets = [0, 0], sizes = [1, 32], strides = [1, 1]} : vector<1x128xf32> to vector<1x32xf32>
      %344 = vector.extract_strided_slice %341 {offsets = [0, 32], sizes = [1, 32], strides = [1, 1]} : vector<1x128xf32> to vector<1x32xf32>
      %345 = vector.extract_strided_slice %342 {offsets = [0, 64], sizes = [1, 32], strides = [1, 1]} : vector<1x128xf32> to vector<1x32xf32>
      %346 = vector.extract_strided_slice %341 {offsets = [0, 96], sizes = [1, 32], strides = [1, 1]} : vector<1x128xf32> to vector<1x32xf32>
      %347 = arith.mulf %344, %332 : vector<1x32xf32>
      %348 = arith.mulf %343, %345 : vector<1x32xf32>
      %349 = arith.addf %347, %348 : vector<1x32xf32>
      %350 = math.tanh %349 : vector<1x32xf32>
      %351 = arith.mulf %346, %350 : vector<1x32xf32>
      %c0_i32_107 = arith.constant 0 : i32
      %352 = vector.broadcast %c0_i32_107 : i32 to vector<8x32xi32>
      %353 = arith.cmpi eq, %333, %352 : vector<8x32xi32>
      %354 = vector.shape_cast %351 : vector<1x32xf32> to vector<1x32xf32>
      %355 = vector.broadcast %354 : vector<1x32xf32> to vector<8x32xf32>
      %356 = arith.select %353, %355, %334 : vector<8x32xi1>, vector<8x32xf32>
      %cst_108 = arith.constant dense<0.000000e+00> : vector<1x128xf32>
      %357 = tpu.matmul %351, %78, %cst_108 {dimension_numbers = #tpu.dot_dimension_numbers<[1], [0], [0], [1], [0, 0, 1, 1], [], []>} : vector<1x32xf32>, vector<32x128xf32>, vector<1x128xf32> -> vector<1x128xf32>
      %358 = arith.addf %139, %357 : vector<1x128xf32>
      %359 = arith.negf %358 : vector<1x128xf32>
      %360 = math.exp %359 : vector<1x128xf32>
      %cst_109 = arith.constant 1.000000e+00 : f32
      %361 = vector.broadcast %cst_109 : f32 to vector<1x128xf32>
      %362 = arith.addf %361, %360 : vector<1x128xf32>
      %363 = arith.divf %361, %362 : vector<1x128xf32>
      %364 = math.tanh %358 : vector<1x128xf32>
      %365 = vector.extract_strided_slice %363 {offsets = [0, 0], sizes = [1, 32], strides = [1, 1]} : vector<1x128xf32> to vector<1x32xf32>
      %366 = vector.extract_strided_slice %363 {offsets = [0, 32], sizes = [1, 32], strides = [1, 1]} : vector<1x128xf32> to vector<1x32xf32>
      %367 = vector.extract_strided_slice %364 {offsets = [0, 64], sizes = [1, 32], strides = [1, 1]} : vector<1x128xf32> to vector<1x32xf32>
      %368 = vector.extract_strided_slice %363 {offsets = [0, 96], sizes = [1, 32], strides = [1, 1]} : vector<1x128xf32> to vector<1x32xf32>
      %369 = arith.mulf %366, %349 : vector<1x32xf32>
      %370 = arith.mulf %365, %367 : vector<1x32xf32>
      %371 = arith.addf %369, %370 : vector<1x32xf32>
      %372 = math.tanh %371 : vector<1x32xf32>
      %373 = arith.mulf %368, %372 : vector<1x32xf32>
      %c1_i32_110 = arith.constant 1 : i32
      %374 = vector.broadcast %c1_i32_110 : i32 to vector<8x32xi32>
      %375 = arith.cmpi eq, %333, %374 : vector<8x32xi32>
      %376 = vector.shape_cast %373 : vector<1x32xf32> to vector<1x32xf32>
      %377 = vector.broadcast %376 : vector<1x32xf32> to vector<8x32xf32>
      %378 = arith.select %375, %377, %356 : vector<8x32xi1>, vector<8x32xf32>
      %cst_111 = arith.constant dense<0.000000e+00> : vector<1x128xf32>
      %379 = tpu.matmul %373, %78, %cst_111 {dimension_numbers = #tpu.dot_dimension_numbers<[1], [0], [0], [1], [0, 0, 1, 1], [], []>} : vector<1x32xf32>, vector<32x128xf32>, vector<1x128xf32> -> vector<1x128xf32>
      %380 = arith.addf %144, %379 : vector<1x128xf32>
      %381 = arith.negf %380 : vector<1x128xf32>
      %382 = math.exp %381 : vector<1x128xf32>
      %cst_112 = arith.constant 1.000000e+00 : f32
      %383 = vector.broadcast %cst_112 : f32 to vector<1x128xf32>
      %384 = arith.addf %383, %382 : vector<1x128xf32>
      %385 = arith.divf %383, %384 : vector<1x128xf32>
      %386 = math.tanh %380 : vector<1x128xf32>
      %387 = vector.extract_strided_slice %385 {offsets = [0, 0], sizes = [1, 32], strides = [1, 1]} : vector<1x128xf32> to vector<1x32xf32>
      %388 = vector.extract_strided_slice %385 {offsets = [0, 32], sizes = [1, 32], strides = [1, 1]} : vector<1x128xf32> to vector<1x32xf32>
      %389 = vector.extract_strided_slice %386 {offsets = [0, 64], sizes = [1, 32], strides = [1, 1]} : vector<1x128xf32> to vector<1x32xf32>
      %390 = vector.extract_strided_slice %385 {offsets = [0, 96], sizes = [1, 32], strides = [1, 1]} : vector<1x128xf32> to vector<1x32xf32>
      %391 = arith.mulf %388, %371 : vector<1x32xf32>
      %392 = arith.mulf %387, %389 : vector<1x32xf32>
      %393 = arith.addf %391, %392 : vector<1x32xf32>
      %394 = math.tanh %393 : vector<1x32xf32>
      %395 = arith.mulf %390, %394 : vector<1x32xf32>
      %c2_i32_113 = arith.constant 2 : i32
      %396 = vector.broadcast %c2_i32_113 : i32 to vector<8x32xi32>
      %397 = arith.cmpi eq, %333, %396 : vector<8x32xi32>
      %398 = vector.shape_cast %395 : vector<1x32xf32> to vector<1x32xf32>
      %399 = vector.broadcast %398 : vector<1x32xf32> to vector<8x32xf32>
      %400 = arith.select %397, %399, %378 : vector<8x32xi1>, vector<8x32xf32>
      %cst_114 = arith.constant dense<0.000000e+00> : vector<1x128xf32>
      %401 = tpu.matmul %395, %78, %cst_114 {dimension_numbers = #tpu.dot_dimension_numbers<[1], [0], [0], [1], [0, 0, 1, 1], [], []>} : vector<1x32xf32>, vector<32x128xf32>, vector<1x128xf32> -> vector<1x128xf32>
      %402 = arith.addf %149, %401 : vector<1x128xf32>
      %403 = arith.negf %402 : vector<1x128xf32>
      %404 = math.exp %403 : vector<1x128xf32>
      %cst_115 = arith.constant 1.000000e+00 : f32
      %405 = vector.broadcast %cst_115 : f32 to vector<1x128xf32>
      %406 = arith.addf %405, %404 : vector<1x128xf32>
      %407 = arith.divf %405, %406 : vector<1x128xf32>
      %408 = math.tanh %402 : vector<1x128xf32>
      %409 = vector.extract_strided_slice %407 {offsets = [0, 0], sizes = [1, 32], strides = [1, 1]} : vector<1x128xf32> to vector<1x32xf32>
      %410 = vector.extract_strided_slice %407 {offsets = [0, 32], sizes = [1, 32], strides = [1, 1]} : vector<1x128xf32> to vector<1x32xf32>
      %411 = vector.extract_strided_slice %408 {offsets = [0, 64], sizes = [1, 32], strides = [1, 1]} : vector<1x128xf32> to vector<1x32xf32>
      %412 = vector.extract_strided_slice %407 {offsets = [0, 96], sizes = [1, 32], strides = [1, 1]} : vector<1x128xf32> to vector<1x32xf32>
      %413 = arith.mulf %410, %393 : vector<1x32xf32>
      %414 = arith.mulf %409, %411 : vector<1x32xf32>
      %415 = arith.addf %413, %414 : vector<1x32xf32>
      %416 = math.tanh %415 : vector<1x32xf32>
      %417 = arith.mulf %412, %416 : vector<1x32xf32>
      %c3_i32_116 = arith.constant 3 : i32
      %418 = vector.broadcast %c3_i32_116 : i32 to vector<8x32xi32>
      %419 = arith.cmpi eq, %333, %418 : vector<8x32xi32>
      %420 = vector.shape_cast %417 : vector<1x32xf32> to vector<1x32xf32>
      %421 = vector.broadcast %420 : vector<1x32xf32> to vector<8x32xf32>
      %422 = arith.select %419, %421, %400 : vector<8x32xi1>, vector<8x32xf32>
      %cst_117 = arith.constant dense<0.000000e+00> : vector<1x128xf32>
      %423 = tpu.matmul %417, %78, %cst_117 {dimension_numbers = #tpu.dot_dimension_numbers<[1], [0], [0], [1], [0, 0, 1, 1], [], []>} : vector<1x32xf32>, vector<32x128xf32>, vector<1x128xf32> -> vector<1x128xf32>
      %424 = arith.addf %154, %423 : vector<1x128xf32>
      %425 = arith.negf %424 : vector<1x128xf32>
      %426 = math.exp %425 : vector<1x128xf32>
      %cst_118 = arith.constant 1.000000e+00 : f32
      %427 = vector.broadcast %cst_118 : f32 to vector<1x128xf32>
      %428 = arith.addf %427, %426 : vector<1x128xf32>
      %429 = arith.divf %427, %428 : vector<1x128xf32>
      %430 = math.tanh %424 : vector<1x128xf32>
      %431 = vector.extract_strided_slice %429 {offsets = [0, 0], sizes = [1, 32], strides = [1, 1]} : vector<1x128xf32> to vector<1x32xf32>
      %432 = vector.extract_strided_slice %429 {offsets = [0, 32], sizes = [1, 32], strides = [1, 1]} : vector<1x128xf32> to vector<1x32xf32>
      %433 = vector.extract_strided_slice %430 {offsets = [0, 64], sizes = [1, 32], strides = [1, 1]} : vector<1x128xf32> to vector<1x32xf32>
      %434 = vector.extract_strided_slice %429 {offsets = [0, 96], sizes = [1, 32], strides = [1, 1]} : vector<1x128xf32> to vector<1x32xf32>
      %435 = arith.mulf %432, %415 : vector<1x32xf32>
      %436 = arith.mulf %431, %433 : vector<1x32xf32>
      %437 = arith.addf %435, %436 : vector<1x32xf32>
      %438 = math.tanh %437 : vector<1x32xf32>
      %439 = arith.mulf %434, %438 : vector<1x32xf32>
      %c4_i32_119 = arith.constant 4 : i32
      %440 = vector.broadcast %c4_i32_119 : i32 to vector<8x32xi32>
      %441 = arith.cmpi eq, %333, %440 : vector<8x32xi32>
      %442 = vector.shape_cast %439 : vector<1x32xf32> to vector<1x32xf32>
      %443 = vector.broadcast %442 : vector<1x32xf32> to vector<8x32xf32>
      %444 = arith.select %441, %443, %422 : vector<8x32xi1>, vector<8x32xf32>
      %cst_120 = arith.constant dense<0.000000e+00> : vector<1x128xf32>
      %445 = tpu.matmul %439, %78, %cst_120 {dimension_numbers = #tpu.dot_dimension_numbers<[1], [0], [0], [1], [0, 0, 1, 1], [], []>} : vector<1x32xf32>, vector<32x128xf32>, vector<1x128xf32> -> vector<1x128xf32>
      %446 = arith.addf %159, %445 : vector<1x128xf32>
      %447 = arith.negf %446 : vector<1x128xf32>
      %448 = math.exp %447 : vector<1x128xf32>
      %cst_121 = arith.constant 1.000000e+00 : f32
      %449 = vector.broadcast %cst_121 : f32 to vector<1x128xf32>
      %450 = arith.addf %449, %448 : vector<1x128xf32>
      %451 = arith.divf %449, %450 : vector<1x128xf32>
      %452 = math.tanh %446 : vector<1x128xf32>
      %453 = vector.extract_strided_slice %451 {offsets = [0, 0], sizes = [1, 32], strides = [1, 1]} : vector<1x128xf32> to vector<1x32xf32>
      %454 = vector.extract_strided_slice %451 {offsets = [0, 32], sizes = [1, 32], strides = [1, 1]} : vector<1x128xf32> to vector<1x32xf32>
      %455 = vector.extract_strided_slice %452 {offsets = [0, 64], sizes = [1, 32], strides = [1, 1]} : vector<1x128xf32> to vector<1x32xf32>
      %456 = vector.extract_strided_slice %451 {offsets = [0, 96], sizes = [1, 32], strides = [1, 1]} : vector<1x128xf32> to vector<1x32xf32>
      %457 = arith.mulf %454, %437 : vector<1x32xf32>
      %458 = arith.mulf %453, %455 : vector<1x32xf32>
      %459 = arith.addf %457, %458 : vector<1x32xf32>
      %460 = math.tanh %459 : vector<1x32xf32>
      %461 = arith.mulf %456, %460 : vector<1x32xf32>
      %c5_i32_122 = arith.constant 5 : i32
      %462 = vector.broadcast %c5_i32_122 : i32 to vector<8x32xi32>
      %463 = arith.cmpi eq, %333, %462 : vector<8x32xi32>
      %464 = vector.shape_cast %461 : vector<1x32xf32> to vector<1x32xf32>
      %465 = vector.broadcast %464 : vector<1x32xf32> to vector<8x32xf32>
      %466 = arith.select %463, %465, %444 : vector<8x32xi1>, vector<8x32xf32>
      %c0_123 = arith.constant 0 : index
      %c0_124 = arith.constant 0 : index
      %467 = vector.load %arg14[%c0_123, %c0_124] : memref<8x32xf32, #tpu.memory_space<vmem>>, vector<8x32xf32>
      tpu.vector_store %arg14[%c0_123, %c0_124], %466 {strides = array<i32>} : memref<8x32xf32, #tpu.memory_space<vmem>>, vector<8x32xf32>,
      %cst_125 = arith.constant -1.000000e+30 : f32
      %468 = vector.broadcast %cst_125 : f32 to vector<8x1xf32>
      %c0_126 = arith.constant 0 : index
      %c0_127 = arith.constant 0 : index
      %469 = vector.load %arg15[%c0_126, %c0_127] : memref<8x1xf32, #tpu.memory_space<vmem>>, vector<8x1xf32>
      tpu.vector_store %arg15[%c0_126, %c0_127], %468 {strides = array<i32>} : memref<8x1xf32, #tpu.memory_space<vmem>>, vector<8x1xf32>,
      %cst_128 = arith.constant 0.000000e+00 : f32
      %470 = vector.broadcast %cst_128 : f32 to vector<8x1xf32>
      %c0_129 = arith.constant 0 : index
      %c0_130 = arith.constant 0 : index
      %471 = vector.load %arg16[%c0_129, %c0_130] : memref<8x1xf32, #tpu.memory_space<vmem>>, vector<8x1xf32>
      tpu.vector_store %arg16[%c0_129, %c0_130], %470 {strides = array<i32>} : memref<8x1xf32, #tpu.memory_space<vmem>>, vector<8x1xf32>,
      %cst_131 = arith.constant 0.000000e+00 : f32
      %472 = vector.broadcast %cst_131 : f32 to vector<8x1xf32>
      %c0_132 = arith.constant 0 : index
      %c0_133 = arith.constant 0 : index
      %473 = vector.load %arg17[%c0_132, %c0_133] : memref<8x1xf32, #tpu.memory_space<vmem>>, vector<8x1xf32>
      tpu.vector_store %arg17[%c0_132, %c0_133], %472 {strides = array<i32>} : memref<8x1xf32, #tpu.memory_space<vmem>>, vector<8x1xf32>,
    } else {
    }
    %c0 = arith.constant 0 : index
    %c0_1 = arith.constant 0 : index
    %3 = vector.load %arg14[%c0, %c0_1] : memref<8x32xf32, #tpu.memory_space<vmem>>, vector<8x32xf32>
    %4 = arith.truncf %3 : vector<8x32xf32> to vector<8x32xbf16>
    %c0_2 = arith.constant 0 : index
    %c0_3 = arith.constant 0 : index
    %5 = vector.load %arg11[%c0_2, %c0_3] : memref<32x128xbf16, #tpu.memory_space<vmem>>, vector<32x128xbf16>
    %cst = arith.constant dense<0.000000e+00> : vector<8x128xf32>
    %6 = tpu.matmul %4, %5, %cst {dimension_numbers = #tpu.dot_dimension_numbers<[1], [0], [0], [1], [0, 0, 1, 1], [], []>} : vector<8x32xbf16>, vector<32x128xbf16>, vector<8x128xf32> -> vector<8x128xf32>
    %c0_4 = arith.constant 0 : index
    %c0_5 = arith.constant 0 : index
    %7 = vector.load %arg12[%c0_4, %c0_5] : memref<1x128xf32, #tpu.memory_space<vmem>>, vector<1x128xf32>
    %8 = vector.broadcast %7 : vector<1x128xf32> to vector<8x128xf32>
    %9 = arith.addf %6, %8 : vector<8x128xf32>
    %c0_6 = arith.constant 0 : index
    %c0_7 = arith.constant 0 : index
    %10 = vector.load %arg15[%c0_6, %c0_7] : memref<8x1xf32, #tpu.memory_space<vmem>>, vector<8x1xf32>
    %cst_8 = arith.constant dense<0xFF800000> : vector<8xf32>
    %11 = vector.multi_reduction <maximumf>, %9, %cst_8 [1] : vector<8x128xf32> to vector<8xf32>
    %12 = vector.shape_cast %11 : vector<8xf32> to vector<8x1xf32>
    %13 = arith.maximumf %10, %12 : vector<8x1xf32>
    %14 = arith.subf %10, %13 : vector<8x1xf32>
    %15 = math.exp %14 : vector<8x1xf32>
    %c0_9 = arith.constant 0 : index
    %c0_10 = arith.constant 0 : index
    %16 = vector.load %arg16[%c0_9, %c0_10] : memref<8x1xf32, #tpu.memory_space<vmem>>, vector<8x1xf32>
    %17 = arith.mulf %15, %16 : vector<8x1xf32>
    %18 = vector.broadcast %13 : vector<8x1xf32> to vector<8x128xf32>
    %19 = arith.subf %9, %18 : vector<8x128xf32>
    %20 = math.exp %19 : vector<8x128xf32>
    %cst_11 = arith.constant dense<0.000000e+00> : vector<8xf32>
    %21 = vector.multi_reduction <add>, %20, %cst_11 [1] : vector<8x128xf32> to vector<8xf32>
    %22 = vector.shape_cast %21 : vector<8xf32> to vector<8x1xf32>
    %23 = arith.addf %17, %22 : vector<8x1xf32>
    %c0_12 = arith.constant 0 : index
    %c0_13 = arith.constant 0 : index
    %24 = vector.load %arg16[%c0_12, %c0_13] : memref<8x1xf32, #tpu.memory_space<vmem>>, vector<8x1xf32>
    tpu.vector_store %arg16[%c0_12, %c0_13], %23 {strides = array<i32>} : memref<8x1xf32, #tpu.memory_space<vmem>>, vector<8x1xf32>,
    %c0_14 = arith.constant 0 : index
    %c0_15 = arith.constant 0 : index
    %25 = vector.load %arg15[%c0_14, %c0_15] : memref<8x1xf32, #tpu.memory_space<vmem>>, vector<8x1xf32>
    tpu.vector_store %arg15[%c0_14, %c0_15], %13 {strides = array<i32>} : memref<8x1xf32, #tpu.memory_space<vmem>>, vector<8x1xf32>,
    %26 = tpu.iota {dimensions = array<i32: 0>} : vector<8x1xi32>
    %c-1_i32 = arith.constant -1 : i32
    %27 = vector.broadcast %c-1_i32 : i32 to vector<8x1xi32>
    %c0_i32_16 = arith.constant 0 : i32
    %28 = vector.broadcast %c0_i32_16 : i32 to vector<8x1xi32>
    %29 = arith.cmpi eq, %26, %28 : vector<8x1xi32>
    %c0_17 = arith.constant 0 : index
    %30 = memref.load %arg2[%c0_17] : memref<6xi32, #tpu.memory_space<smem>>
    %31 = vector.broadcast %30 : i32 to vector<8x1xi32>
    %32 = arith.select %29, %31, %27 : vector<8x1xi1>, vector<8x1xi32>
    %c1_i32 = arith.constant 1 : i32
    %33 = vector.broadcast %c1_i32 : i32 to vector<8x1xi32>
    %34 = arith.cmpi eq, %26, %33 : vector<8x1xi32>
    %c1 = arith.constant 1 : index
    %35 = memref.load %arg2[%c1] : memref<6xi32, #tpu.memory_space<smem>>
    %36 = vector.broadcast %35 : i32 to vector<8x1xi32>
    %37 = arith.select %34, %36, %32 : vector<8x1xi1>, vector<8x1xi32>
    %c2_i32 = arith.constant 2 : i32
    %38 = vector.broadcast %c2_i32 : i32 to vector<8x1xi32>
    %39 = arith.cmpi eq, %26, %38 : vector<8x1xi32>
    %c2 = arith.constant 2 : index
    %40 = memref.load %arg2[%c2] : memref<6xi32, #tpu.memory_space<smem>>
    %41 = vector.broadcast %40 : i32 to vector<8x1xi32>
    %42 = arith.select %39, %41, %37 : vector<8x1xi1>, vector<8x1xi32>
    %c3_i32 = arith.constant 3 : i32
    %43 = vector.broadcast %c3_i32 : i32 to vector<8x1xi32>
    %44 = arith.cmpi eq, %26, %43 : vector<8x1xi32>
    %c3 = arith.constant 3 : index
    %45 = memref.load %arg2[%c3] : memref<6xi32, #tpu.memory_space<smem>>
    %46 = vector.broadcast %45 : i32 to vector<8x1xi32>
    %47 = arith.select %44, %46, %42 : vector<8x1xi1>, vector<8x1xi32>
    %c4_i32 = arith.constant 4 : i32
    %48 = vector.broadcast %c4_i32 : i32 to vector<8x1xi32>
    %49 = arith.cmpi eq, %26, %48 : vector<8x1xi32>
    %c4 = arith.constant 4 : index
    %50 = memref.load %arg2[%c4] : memref<6xi32, #tpu.memory_space<smem>>
    %51 = vector.broadcast %50 : i32 to vector<8x1xi32>
    %52 = arith.select %49, %51, %47 : vector<8x1xi1>, vector<8x1xi32>
    %c5_i32 = arith.constant 5 : i32
    %53 = vector.broadcast %c5_i32 : i32 to vector<8x1xi32>
    %54 = arith.cmpi eq, %26, %53 : vector<8x1xi32>
    %c5 = arith.constant 5 : index
    %55 = memref.load %arg2[%c5] : memref<6xi32, #tpu.memory_space<smem>>
    %56 = vector.broadcast %55 : i32 to vector<8x1xi32>
    %57 = arith.select %54, %56, %52 : vector<8x1xi1>, vector<8x1xi32>
    %58 = tpu.iota {dimensions = array<i32: 1>} : vector<8x128xi32>
    %c128_i32 = arith.constant 128 : i32
    %59 = arith.muli %arg0, %c128_i32 : i32
    %60 = vector.broadcast %59 : i32 to vector<8x1xi32>
    %61 = arith.subi %57, %60 : vector<8x1xi32>
    %62 = vector.broadcast %61 : vector<8x1xi32> to vector<8x128xi32>
    %63 = arith.cmpi eq, %58, %62 : vector<8x128xi32>
    %c0_18 = arith.constant 0 : index
    %c0_19 = arith.constant 0 : index
    %64 = vector.load %arg17[%c0_18, %c0_19] : memref<8x1xf32, #tpu.memory_space<vmem>>, vector<8x1xf32>
    %cst_20 = arith.constant 0.000000e+00 : f32
    %65 = vector.broadcast %cst_20 : f32 to vector<8x128xf32>
    %66 = arith.select %63, %9, %65 : vector<8x128xi1>, vector<8x128xf32>
    %cst_21 = arith.constant dense<0.000000e+00> : vector<8xf32>
    %67 = vector.multi_reduction <add>, %66, %cst_21 [1] : vector<8x128xf32> to vector<8xf32>
    %68 = vector.shape_cast %67 : vector<8xf32> to vector<8x1xf32>
    %69 = arith.addf %64, %68 : vector<8x1xf32>
    %c0_22 = arith.constant 0 : index
    %c0_23 = arith.constant 0 : index
    %70 = vector.load %arg17[%c0_22, %c0_23] : memref<8x1xf32, #tpu.memory_space<vmem>>, vector<8x1xf32>
    tpu.vector_store %arg17[%c0_22, %c0_23], %69 {strides = array<i32>} : memref<8x1xf32, #tpu.memory_space<vmem>>, vector<8x1xf32>,
    %c1_i32_24 = arith.constant 1 : i32
    %71 = arith.cmpi eq, %arg0, %c1_i32_24 : i32
    %72 = arith.extui %71 : i1 to i32
    %c0_i32_25 = arith.constant 0 : i32
    %73 = arith.cmpi ne, %72, %c0_i32_25 : i32
    scf.if %73 {
      %c0_26 = arith.constant 0 : index
      %c0_27 = arith.constant 0 : index
      %74 = vector.load %arg15[%c0_26, %c0_27] : memref<8x1xf32, #tpu.memory_space<vmem>>, vector<8x1xf32>
      %c0_28 = arith.constant 0 : index
      %c0_29 = arith.constant 0 : index
      %75 = vector.load %arg16[%c0_28, %c0_29] : memref<8x1xf32, #tpu.memory_space<vmem>>, vector<8x1xf32>
      %76 = math.log %75 : vector<8x1xf32>
      %77 = arith.addf %74, %76 : vector<8x1xf32>
      %c0_30 = arith.constant 0 : index
      %c0_31 = arith.constant 0 : index
      %78 = vector.load %arg17[%c0_30, %c0_31] : memref<8x1xf32, #tpu.memory_space<vmem>>, vector<8x1xf32>
      %79 = arith.subf %77, %78 : vector<8x1xf32>
      %c0_32 = arith.constant 0 : index
      %c0_33 = arith.constant 0 : index
      %80 = vector.load %arg13[%c0_32, %c0_33] : memref<8x1xf32, #tpu.memory_space<vmem>>, vector<8x1xf32>
      tpu.vector_store %arg13[%c0_32, %c0_33], %79 {strides = array<i32>} : memref<8x1xf32, #tpu.memory_space<vmem>>, vector<8x1xf32>,
    } else {
    }
    return
  }
  func.func @transform_0(%arg0: i32, %arg1: memref<10xi32, #tpu.memory_space<smem>>, %arg2: memref<6xi32, #tpu.memory_space<smem>>) -> (i32, i32) {
    %c0_i32 = arith.constant 0 : i32
    %c0_i32_0 = arith.constant 0 : i32
    %c0_i32_1 = arith.constant 0 : i32
    return %c0_i32, %c0_i32_0 : i32, i32
  }
  func.func @transform_1(%arg0: i32, %arg1: memref<10xi32, #tpu.memory_space<smem>>, %arg2: memref<6xi32, #tpu.memory_space<smem>>) -> (i32, i32) {
    %c0_i32 = arith.constant 0 : i32
    %c0_i32_0 = arith.constant 0 : i32
    %c0_i32_1 = arith.constant 0 : i32
    return %c0_i32, %c0_i32_0 : i32, i32
  }
  func.func @transform_2(%arg0: i32, %arg1: memref<10xi32, #tpu.memory_space<smem>>, %arg2: memref<6xi32, #tpu.memory_space<smem>>) -> (i32, i32) {
    %c0_i32 = arith.constant 0 : i32
    %c0_i32_0 = arith.constant 0 : i32
    %c0_i32_1 = arith.constant 0 : i32
    return %c0_i32, %c0_i32_0 : i32, i32
  }
  func.func @transform_3(%arg0: i32, %arg1: memref<10xi32, #tpu.memory_space<smem>>, %arg2: memref<6xi32, #tpu.memory_space<smem>>) -> (i32, i32) {
    %c0_i32 = arith.constant 0 : i32
    %c0_i32_0 = arith.constant 0 : i32
    %c0_i32_1 = arith.constant 0 : i32
    return %c0_i32, %c0_i32_0 : i32, i32
  }
  func.func @transform_4(%arg0: i32, %arg1: memref<10xi32, #tpu.memory_space<smem>>, %arg2: memref<6xi32, #tpu.memory_space<smem>>) -> (i32, i32) {
    %c0_i32 = arith.constant 0 : i32
    %c0_i32_0 = arith.constant 0 : i32
    %c0_i32_1 = arith.constant 0 : i32
    return %c0_i32, %c0_i32_0 : i32, i32
  }
  func.func @transform_5(%arg0: i32, %arg1: memref<10xi32, #tpu.memory_space<smem>>, %arg2: memref<6xi32, #tpu.memory_space<smem>>) -> (i32, i32) {
    %c0_i32 = arith.constant 0 : i32
    %c0_i32_0 = arith.constant 0 : i32
    %c0_i32_1 = arith.constant 0 : i32
    return %c0_i32, %c0_i32_0 : i32, i32
  }
  func.func @transform_6(%arg0: i32, %arg1: memref<10xi32, #tpu.memory_space<smem>>, %arg2: memref<6xi32, #tpu.memory_space<smem>>) -> (i32, i32) {
    %c0_i32 = arith.constant 0 : i32
    %c0_i32_0 = arith.constant 0 : i32
    %c0_i32_1 = arith.constant 0 : i32
    return %c0_i32, %c0_i32_0 : i32, i32
  }
  func.func @transform_7(%arg0: i32, %arg1: memref<10xi32, #tpu.memory_space<smem>>, %arg2: memref<6xi32, #tpu.memory_space<smem>>) -> (i32, i32) {
    %c0_i32 = arith.constant 0 : i32
    %c0_i32_0 = arith.constant 0 : i32
    %c0_i32_1 = arith.constant 0 : i32
    return %c0_i32, %c0_i32_0 : i32, i32
  }
  func.func @transform_8(%arg0: i32, %arg1: memref<10xi32, #tpu.memory_space<smem>>, %arg2: memref<6xi32, #tpu.memory_space<smem>>) -> (i32, i32) {
    %c0_i32 = arith.constant 0 : i32
    %c0_i32_0 = arith.constant 0 : i32
    return %c0_i32, %arg0 : i32, i32
  }
  func.func @transform_9(%arg0: i32, %arg1: memref<10xi32, #tpu.memory_space<smem>>, %arg2: memref<6xi32, #tpu.memory_space<smem>>) -> (i32, i32) {
    %c0_i32 = arith.constant 0 : i32
    %c0_i32_0 = arith.constant 0 : i32
    return %c0_i32, %arg0 : i32, i32
  }
  func.func @transform_10(%arg0: i32, %arg1: memref<10xi32, #tpu.memory_space<smem>>, %arg2: memref<6xi32, #tpu.memory_space<smem>>) -> (i32, i32) {
    %c0_i32 = arith.constant 0 : i32
    %c0_i32_0 = arith.constant 0 : i32
    %c0_i32_1 = arith.constant 0 : i32
    return %c0_i32, %c0_i32_0 : i32, i32
  }
}

</mosaic_0001>

<llo_original>
// kernel: tpu_custom_call.1
$region0: #{tpu_custom_call.1}
  #allocation0 [shape = 'u32[]', space=smem, size = 0x4, offset = 0x4, fixed_abs, tag = 'smem constant byte address 0x4 - core index']
  #allocation1 [shape = 'u32[72,128]{1,0:T(1,128)}', space=vmem, size = 0x9000, scoped, tag = 'internal scratch']
  #allocation2 [shape = 'f32[8,32]{1,0:T(8,128)}', space=vmem, size = 0x1000, scoped, tag = 'scratch operand']
  #allocation3 [shape = 'f32[8,1]{1,0:T(8,128)}', space=vmem, size = 0x1000, scoped, tag = 'scratch operand']
  #allocation4 [shape = 'f32[8,1]{1,0:T(8,128)}', space=vmem, size = 0x1000, scoped, tag = 'scratch operand']
  #allocation5 [shape = 'f32[8,1]{1,0:T(8,128)}', space=vmem, size = 0x1000, scoped, tag = 'scratch operand']
  #allocation6 [shape = 's32[1]{0}', space=sflag, size = 0x4, scoped, tag = 'scoped memory for tpu_custom_call.1']
  #allocation7 [shape = 'u8[512]{0}', space=smem, size = 0x200, scoped, tag = 'prefetched SMEM operand 0']
  #allocation8 [shape = 'u8[512]{0}', space=smem, size = 0x200, scoped, tag = 'prefetched SMEM operand 1']
  %s0 = inlined_call_operand.vmem [shape: s32[10], index: 0, kind: input, shape index: {}]
  %s1 = inlined_call_operand.vmem [shape: s32[6], index: 1, kind: input, shape index: {}]
  %s2 = inlined_call_operand.vmem [shape: f32[64,32], index: 2, kind: input, shape index: {}]
  %s3 = inlined_call_operand.vmem [shape: f32[200,32], index: 3, kind: input, shape index: {}]
  %s4 = inlined_call_operand.vmem [shape: f32[32,128], index: 4, kind: input, shape index: {}]
  %s5 = inlined_call_operand.vmem [shape: f32[32,128], index: 5, kind: input, shape index: {}]
  %s6 = inlined_call_operand.vmem [shape: f32[1,128], index: 6, kind: input, shape index: {}]
  %s7 = inlined_call_operand.vmem [shape: f32[32,128], index: 7, kind: input, shape index: {}]
  %s8 = inlined_call_operand.vmem [shape: f32[32,128], index: 8, kind: input, shape index: {}]
  %s9 = inlined_call_operand.vmem [shape: f32[1,128], index: 9, kind: input, shape index: {}]
  %s10 = inlined_call_operand.vmem [shape: bf16[32,256], index: 10, kind: input, shape index: {}]
  %s11 = inlined_call_operand.vmem [shape: f32[1,256], index: 11, kind: input, shape index: {}]
  %s12 = inlined_call_operand.vmem [shape: f32[8,1], index: 12, kind: output, shape index: {}]
  %s13 = sld [smem:[#allocation0]]
  $region122: #{tpu_custom_call.1} parent=0
    _
  %s15 = ssub.s32 1, %s13
  %s16 = scalar_select 0, %s15, %s13
  %s18 = sshll.u32 %s0, 4
  %s19 = int_to_ptr.vmem [resolvable:$true] %s18
  %21 = dma.vmem_to_smem %s19, 16, [#allocation7], [#allocation6]
  %s23 = sshll.u32 %s1, 4
  %s24 = int_to_ptr.vmem [resolvable:$true] %s23
  %26 = dma.vmem_to_smem %s24, 16, [#allocation8], [#allocation6]
  %28 = dma.done [#allocation6], 32
  %29 = sfence
  $region1: #{tpu_custom_call.1} parent=0
    #allocation9 [shape = 'u8[16384]{0}', space=vmem, size = 0x4000, scoped, tag = 'input window, operand 10']
    loop: start=0, step=1, limit=4
    $region2: #{tpu_custom_call.1} parent=1 // loop_pre_header
      _
    $region3: #{tpu_custom_call.1} parent=1 // loop_header
      %s31 = sphi 0, %s35
      %p32 = scmp.ge.s32.totalorder %s31, 4
      %s39 = sphi 0, %s39
      %s41 = sphi 0, %s39
      %s42 = sphi 0, %s41
      %s56 = sphi 0, %s42
      %s60 = sphi 0, %s60
      %s62 = sphi 0, %s60
      %s63 = sphi 0, %s62
      %s77 = sphi 0, %s63
      %s81 = sphi 0, %s81
      %s83 = sphi 0, %s81
      %s84 = sphi 0, %s83
      %s98 = sphi 0, %s84
      %s102 = sphi 0, %s102
      %s104 = sphi 0, %s102
      %s105 = sphi 0, %s104
      %s119 = sphi 0, %s105
      %s123 = sphi 0, %s123
      %s125 = sphi 0, %s123
      %s126 = sphi 0, %s125
      %s140 = sphi 0, %s126
      %s144 = sphi 0, %s144
      %s146 = sphi 0, %s144
      %s147 = sphi 0, %s146
      %s161 = sphi 0, %s147
      %s165 = sphi 0, %s165
      %s167 = sphi 0, %s165
      %s168 = sphi 0, %s167
      %s182 = sphi 0, %s168
      %s186 = sphi 0, %s186
      %s188 = sphi 0, %s186
      %s189 = sphi 0, %s188
      %s203 = sphi 0, %s189
      %s209 = sphi 0, %s211
      %s212 = sphi 0, %s209
      %s213 = sphi 0, %s212
      %s229 = sphi 0, %s213
      %s235 = sphi 0, %s237
      %s238 = sphi 0, %s235
      %s239 = sphi 0, %s238
      %s255 = sphi 0, %s239
      %s259 = sphi 0, %s259
      %s261 = sphi 0, %s259
      %s262 = sphi 0, %s261
      %s276 = sphi 0, %s262
    $region4: #{tpu_custom_call.1} parent=1 // loop_header_branch
      %34 = sbr.rel (%p32) target = $region8
    $region5: #{tpu_custom_call.1} parent=1 // loop_body
      %s36 = ssub.s32 %s31, 1
      %s37 = ssub.s32 %s31, 2
      %s38 = sadd.s32 %s31, 1
      %s40 = sadd.s32 %s39, 1
      %p43 = scmp.eq.s32.totalorder %s31, 1
      %p44 = scmp.ne.s32.totalorder %s39, %s41
      %p45 = scmp.eq.s32.totalorder %s31, 0
      %p46 = por %p44, %p45
      %p47 = scmp.ne.s32.totalorder %s39, %s41
      %p48 = scmp.eq.s32.totalorder %s36, 1
      %p49 = por %p47, %p48
      %p50 = scmp.ne.s32.totalorder %s41, %s42
      %p51 = scmp.eq.s32.totalorder %s36, 0
      %p52 = por %p50, %p51
      %p53 = scmp.ne.s32.totalorder %s41, %s42
      %p54 = scmp.eq.s32.totalorder %s37, 1
      %p55 = por %p53, %p54
      %p57 = scmp.ne.s32.totalorder %s42, %s56
      %p58 = scmp.eq.s32.totalorder %s37, 0
      %p59 = por %p57, %p58
      %s61 = sadd.s32 %s60, 1
      %p64 = scmp.eq.s32.totalorder %s31, 1
      %p65 = scmp.ne.s32.totalorder %s60, %s62
      %p66 = scmp.eq.s32.totalorder %s31, 0
      %p67 = por %p65, %p66
      %p68 = scmp.ne.s32.totalorder %s60, %s62
      %p69 = scmp.eq.s32.totalorder %s36, 1
      %p70 = por %p68, %p69
      %p71 = scmp.ne.s32.totalorder %s62, %s63
      %p72 = scmp.eq.s32.totalorder %s36, 0
      %p73 = por %p71, %p72
      %p74 = scmp.ne.s32.totalorder %s62, %s63
      %p75 = scmp.eq.s32.totalorder %s37, 1
      %p76 = por %p74, %p75
      %p78 = scmp.ne.s32.totalorder %s63, %s77
      %p79 = scmp.eq.s32.totalorder %s37, 0
      %p80 = por %p78, %p79
      %s82 = sadd.s32 %s81, 1
      %p85 = scmp.eq.s32.totalorder %s31, 1
      %p86 = scmp.ne.s32.totalorder %s81, %s83
      %p87 = scmp.eq.s32.totalorder %s31, 0
      %p88 = por %p86, %p87
      %p89 = scmp.ne.s32.totalorder %s81, %s83
      %p90 = scmp.eq.s32.totalorder %s36, 1
      %p91 = por %p89, %p90
      %p92 = scmp.ne.s32.totalorder %s83, %s84
      %p93 = scmp.eq.s32.totalorder %s36, 0
      %p94 = por %p92, %p93
      %p95 = scmp.ne.s32.totalorder %s83, %s84
      %p96 = scmp.eq.s32.totalorder %s37, 1
      %p97 = por %p95, %p96
      %p99 = scmp.ne.s32.totalorder %s84, %s98
      %p100 = scmp.eq.s32.totalorder %s37, 0
      %p101 = por %p99, %p100
      %s103 = sadd.s32 %s102, 1
      %p106 = scmp.eq.s32.totalorder %s31, 1
      %p107 = scmp.ne.s32.totalorder %s102, %s104
      %p108 = scmp.eq.s32.totalorder %s31, 0
      %p109 = por %p107, %p108
      %p110 = scmp.ne.s32.totalorder %s102, %s104
      %p111 = scmp.eq.s32.totalorder %s36, 1
      %p112 = por %p110, %p111
      %p113 = scmp.ne.s32.totalorder %s104, %s105
      %p114 = scmp.eq.s32.totalorder %s36, 0
      %p115 = por %p113, %p114
      %p116 = scmp.ne.s32.totalorder %s104, %s105
      %p117 = scmp.eq.s32.totalorder %s37, 1
      %p118 = por %p116, %p117
      %p120 = scmp.ne.s32.totalorder %s105, %s119
      %p121 = scmp.eq.s32.totalorder %s37, 0
      %p122 = por %p120, %p121
      %s124 = sadd.s32 %s123, 1
      %p127 = scmp.eq.s32.totalorder %s31, 1
      %p128 = scmp.ne.s32.totalorder %s123, %s125
      %p129 = scmp.eq.s32.totalorder %s31, 0
      %p130 = por %p128, %p129
      %p131 = scmp.ne.s32.totalorder %s123, %s125
      %p132 = scmp.eq.s32.totalorder %s36, 1
      %p133 = por %p131, %p132
      %p134 = scmp.ne.s32.totalorder %s125, %s126
      %p135 = scmp.eq.s32.totalorder %s36, 0
      %p136 = por %p134, %p135
      %p137 = scmp.ne.s32.totalorder %s125, %s126
      %p138 = scmp.eq.s32.totalorder %s37, 1
      %p139 = por %p137, %p138
      %p141 = scmp.ne.s32.totalorder %s126, %s140
      %p142 = scmp.eq.s32.totalorder %s37, 0
      %p143 = por %p141, %p142
      %s145 = sadd.s32 %s144, 1
      %p148 = scmp.eq.s32.totalorder %s31, 1
      %p149 = scmp.ne.s32.totalorder %s144, %s146
      %p150 = scmp.eq.s32.totalorder %s31, 0
      %p151 = por %p149, %p150
      %p152 = scmp.ne.s32.totalorder %s144, %s146
      %p153 = scmp.eq.s32.totalorder %s36, 1
      %p154 = por %p152, %p153
      %p155 = scmp.ne.s32.totalorder %s146, %s147
      %p156 = scmp.eq.s32.totalorder %s36, 0
      %p157 = por %p155, %p156
      %p158 = scmp.ne.s32.totalorder %s146, %s147
      %p159 = scmp.eq.s32.totalorder %s37, 1
      %p160 = por %p158, %p159
      %p162 = scmp.ne.s32.totalorder %s147, %s161
      %p163 = scmp.eq.s32.totalorder %s37, 0
      %p164 = por %p162, %p163
      %s166 = sadd.s32 %s165, 1
      %p169 = scmp.eq.s32.totalorder %s31, 1
      %p170 = scmp.ne.s32.totalorder %s165, %s167
      %p171 = scmp.eq.s32.totalorder %s31, 0
      %p172 = por %p170, %p171
      %p173 = scmp.ne.s32.totalorder %s165, %s167
      %p174 = scmp.eq.s32.totalorder %s36, 1
      %p175 = por %p173, %p174
      %p176 = scmp.ne.s32.totalorder %s167, %s168
      %p177 = scmp.eq.s32.totalorder %s36, 0
      %p178 = por %p176, %p177
      %p179 = scmp.ne.s32.totalorder %s167, %s168
      %p180 = scmp.eq.s32.totalorder %s37, 1
      %p181 = por %p179, %p180
      %p183 = scmp.ne.s32.totalorder %s168, %s182
      %p184 = scmp.eq.s32.totalorder %s37, 0
      %p185 = por %p183, %p184
      %s187 = sadd.s32 %s186, 1
      %p190 = scmp.eq.s32.totalorder %s31, 1
      %p191 = scmp.ne.s32.totalorder %s186, %s188
      %p192 = scmp.eq.s32.totalorder %s31, 0
      %p193 = por %p191, %p192
      %p194 = scmp.ne.s32.totalorder %s186, %s188
      %p195 = scmp.eq.s32.totalorder %s36, 1
      %p196 = por %p194, %p195
      %p197 = scmp.ne.s32.totalorder %s188, %s189
      %p198 = scmp.eq.s32.totalorder %s36, 0
      %p199 = por %p197, %p198
      %p200 = scmp.ne.s32.totalorder %s188, %s189
      %p201 = scmp.eq.s32.totalorder %s37, 1
      %p202 = por %p200, %p201
      %p204 = scmp.ne.s32.totalorder %s189, %s203
      %p205 = scmp.eq.s32.totalorder %s37, 0
      %p206 = por %p204, %p205
      %s207 = ssub.s32 %s31, %s38
      %p208 = scmp.eq.s32.totalorder %s207, 0
      %s210 = sadd.s32 %s209, 1
      %s211 = scalar_select %p208, %s209, %s210
      %p214 = pneg %p208
      %p215 = scmp.eq.s32.totalorder %s31, 1
      %p216 = por %p214, %p215
      %p217 = scmp.ne.s32.totalorder %s209, %s212
      %p218 = scmp.eq.s32.totalorder %s31, 0
      %p219 = por %p217, %p218
      %p220 = scmp.ne.s32.totalorder %s209, %s212
      %p221 = scmp.eq.s32.totalorder %s36, 1
      %p222 = por %p220, %p221
      %p223 = scmp.ne.s32.totalorder %s212, %s213
      %p224 = scmp.eq.s32.totalorder %s36, 0
      %p225 = por %p223, %p224
      %p226 = scmp.ne.s32.totalorder %s212, %s213
      %p227 = scmp.eq.s32.totalorder %s37, 1
      %p228 = por %p226, %p227
      %p230 = scmp.ne.s32.totalorder %s213, %s229
      %p231 = scmp.eq.s32.totalorder %s37, 0
      %p232 = por %p230, %p231
      %s233 = ssub.s32 %s31, %s38
      %p234 = scmp.eq.s32.totalorder %s233, 0
      %s236 = sadd.s32 %s235, 1
      %s237 = scalar_select %p234, %s235, %s236
      %p240 = pneg %p234
      %p241 = scmp.eq.s32.totalorder %s31, 1
      %p242 = por %p240, %p241
      %p243 = scmp.ne.s32.totalorder %s235, %s238
      %p244 = scmp.eq.s32.totalorder %s31, 0
      %p245 = por %p243, %p244
      %p246 = scmp.ne.s32.totalorder %s235, %s238
      %p247 = scmp.eq.s32.totalorder %s36, 1
      %p248 = por %p246, %p247
      %p249 = scmp.ne.s32.totalorder %s238, %s239
      %p250 = scmp.eq.s32.totalorder %s36, 0
      %p251 = por %p249, %p250
      %p252 = scmp.ne.s32.totalorder %s238, %s239
      %p253 = scmp.eq.s32.totalorder %s37, 1
      %p254 = por %p252, %p253
      %p256 = scmp.ne.s32.totalorder %s239, %s255
      %p257 = scmp.eq.s32.totalorder %s37, 0
      %p258 = por %p256, %p257
      %s260 = sadd.s32 %s259, 1
      %p263 = scmp.eq.s32.totalorder %s31, 1
      %p264 = scmp.ne.s32.totalorder %s259, %s261
      %p265 = scmp.eq.s32.totalorder %s31, 0
      %p266 = por %p264, %p265
      %p267 = scmp.ne.s32.totalorder %s259, %s261
      %p268 = scmp.eq.s32.totalorder %s36, 1
      %p269 = por %p267, %p268
      %p270 = scmp.ne.s32.totalorder %s261, %s262
      %p271 = scmp.eq.s32.totalorder %s36, 0
      %p272 = por %p270, %p271
      %p273 = scmp.ne.s32.totalorder %s261, %s262
      %p274 = scmp.eq.s32.totalorder %s37, 1
      %p275 = por %p273, %p274
      %p277 = scmp.ne.s32.totalorder %s262, %s276
      %p278 = scmp.eq.s32.totalorder %s37, 0
      %p279 = por %p277, %p278
      %p280 = scmp.le.s32.totalorder 1, %s31
      %p281 = scmp.lt.s32.totalorder %s31, 3
      %p282 = pnand %p280, %p281
      %p283 = pneg %p282
      // Predicated region
      $region9: #{tpu_custom_call.1} parent=5 // pred_check
        _
      $region10: #{tpu_custom_call.1} parent=5 // pred_check_branch
        %285 = sbr.rel (%p282) target = $region12
      $region11: #{tpu_custom_call.1} parent=5 // pred_region
        %s286 = ssub.s32 %s31, 1
        // Predicated region
        $region13: #{tpu_custom_call.1} parent=11 // pred_check
          %p287 = pneg %p52
        $region14: #{tpu_custom_call.1} parent=11 // pred_check_branch
          %289 = sbr.rel (%p287) target = $region16
        $region15: #{tpu_custom_call.1} parent=11 // pred_region
          _
        $region16: #{tpu_custom_call.1} parent=11 // pred_fallthru
          _
        // Predicated region
        $region17: #{tpu_custom_call.1} parent=11 // pred_check
          %p290 = pneg %p73
        $region18: #{tpu_custom_call.1} parent=11 // pred_check_branch
          %292 = sbr.rel (%p290) target = $region20
        $region19: #{tpu_custom_call.1} parent=11 // pred_region
          _
        $region20: #{tpu_custom_call.1} parent=11 // pred_fallthru
          _
        // Predicated region
        $region21: #{tpu_custom_call.1} parent=11 // pred_check
          %p293 = pneg %p94
        $region22: #{tpu_custom_call.1} parent=11 // pred_check_branch
          %295 = sbr.rel (%p293) target = $region24
        $region23: #{tpu_custom_call.1} parent=11 // pred_region
          _
        $region24: #{tpu_custom_call.1} parent=11 // pred_fallthru
          _
        // Predicated region
        $region25: #{tpu_custom_call.1} parent=11 // pred_check
          %p296 = pneg %p115
        $region26: #{tpu_custom_call.1} parent=11 // pred_check_branch
          %298 = sbr.rel (%p296) target = $region28
        $region27: #{tpu_custom_call.1} parent=11 // pred_region
          _
        $region28: #{tpu_custom_call.1} parent=11 // pred_fallthru
          _
        // Predicated region
        $region29: #{tpu_custom_call.1} parent=11 // pred_check
          %p299 = pneg %p136
        $region30: #{tpu_custom_call.1} parent=11 // pred_check_branch
          %301 = sbr.rel (%p299) target = $region32
        $region31: #{tpu_custom_call.1} parent=11 // pred_region
          _
        $region32: #{tpu_custom_call.1} parent=11 // pred_fallthru
          _
        // Predicated region
        $region33: #{tpu_custom_call.1} parent=11 // pred_check
          %p302 = pneg %p157
        $region34: #{tpu_custom_call.1} parent=11 // pred_check_branch
          %304 = sbr.rel (%p302) target = $region36
        $region35: #{tpu_custom_call.1} parent=11 // pred_region
          _
        $region36: #{tpu_custom_call.1} parent=11 // pred_fallthru
          _
        // Predicated region
        $region37: #{tpu_custom_call.1} parent=11 // pred_check
          %p305 = pneg %p178
        $region38: #{tpu_custom_call.1} parent=11 // pred_check_branch
          %307 = sbr.rel (%p305) target = $region40
        $region39: #{tpu_custom_call.1} parent=11 // pred_region
          _
        $region40: #{tpu_custom_call.1} parent=11 // pred_fallthru
          _
        // Predicated region
        $region41: #{tpu_custom_call.1} parent=11 // pred_check
          %p308 = pneg %p199
        $region42: #{tpu_custom_call.1} parent=11 // pred_check_branch
          %310 = sbr.rel (%p308) target = $region44
        $region43: #{tpu_custom_call.1} parent=11 // pred_region
          _
        $region44: #{tpu_custom_call.1} parent=11 // pred_fallthru
          _
      $region12: #{tpu_custom_call.1} parent=5 // pred_fallthru
        _
      %p311 = scmp.lt.s32.totalorder %s31, 2
      // Predicated region
      $region45: #{tpu_custom_call.1} parent=5 // pred_check
        %p312 = pneg %p311
      $region46: #{tpu_custom_call.1} parent=5 // pred_check_branch
        %314 = sbr.rel (%p312) target = $region48
      $region47: #{tpu_custom_call.1} parent=5 // pred_region
        // Predicated region
        $region49: #{tpu_custom_call.1} parent=47 // pred_check
          %p315 = pneg %p219
        $region50: #{tpu_custom_call.1} parent=47 // pred_check_branch
          %317 = sbr.rel (%p315) target = $region52
        $region51: #{tpu_custom_call.1} parent=47 // pred_region
          %s318 = sand.u32 %s209, 1
          %s319 = sand.u32 %s209, 1
          %s320 = smul.addr %s319, 16
          %s321 = scalar_lea.vmem [#allocation9], %s320
          %s322 = smul.addr %s31, 4
          %s323 = scalar_lea.vmem %s10, %s322
          // Predicated region
          $region53: #{tpu_custom_call.1} parent=51 // pred_check
            _
          $region54: #{tpu_custom_call.1} parent=51 // pred_check_branch
            %325 = sbr.rel (0) target = $region56
          $region55: #{tpu_custom_call.1} parent=51 // pred_region
            // Predicated region
            $region57: #{tpu_custom_call.1} parent=55 // pred_check
              _
            $region58: #{tpu_custom_call.1} parent=55 // pred_check_branch
              %327 = sbr.rel target = $region60
            $region59: #{tpu_custom_call.1} parent=55 // pred_region
              // Predicated region
              $region72: #{tpu_custom_call.1} parent=59 // pred_check
                _
              $region73: #{tpu_custom_call.1} parent=59 // pred_check_branch
                %349 = sbr.rel (0) target = $region75
              $region74: #{tpu_custom_call.1} parent=59 // pred_region
                loop: start=0, step=1, limit=1
                $region76: #{tpu_custom_call.1} parent=74 // loop_pre_header
                  _
                $region77: #{tpu_custom_call.1} parent=74 // loop_header
                  %s351 = sphi 0, %s355
                  %p352 = scmp.ge.s32.totalorder %s351, 1
                  %s356 = sphi %s323, %s323
                  %s357 = sphi %s321, %s321
                $region78: #{tpu_custom_call.1} parent=74 // loop_header_branch
                  %354 = sbr.rel (%p352) target = $region82
                $region79: #{tpu_custom_call.1} parent=74 // loop_body
                  _
                $region80: #{tpu_custom_call.1} parent=74 // loop_footer
                  %s355 = sadd.s32 1, %s351
                $region81: #{tpu_custom_call.1} parent=74 // loop_footer_branch
                  %350 = sbr.rel target = $region77
                $region82: #{tpu_custom_call.1} parent=74 // loop_exit
                  _
                %s359 = ssub.s32 16, 1
                loop: start=0, step=1, limit=1
                $region83: #{tpu_custom_call.1} parent=74 // loop_pre_header
                  _
                $region84: #{tpu_custom_call.1} parent=74 // loop_header
                  %s361 = sphi 0, %s365
                  %p362 = scmp.ge.s32.totalorder %s361, 1
                  %s366 = sphi %s323, %s323
                  %s367 = sphi %s321, %s321
                $region85: #{tpu_custom_call.1} parent=74 // loop_header_branch
                  %364 = sbr.rel (%p362) target = $region89
                $region86: #{tpu_custom_call.1} parent=74 // loop_body
                  %v368 = vld [vmem:[%s366] sm:%s359]
                  %369 = vst [vmem:[%s367] sm:%s359] %v368
                  %v370 = vld [vmem:[%s366 + $0x8] sm:%s359]
                  %371 = vst [vmem:[%s367 + $0x4] sm:%s359] %v370
                  %v372 = vld [vmem:[%s366 + $0x10] sm:%s359]
                  %373 = vst [vmem:[%s367 + $0x8] sm:%s359] %v372
                  %v374 = vld [vmem:[%s366 + $0x18] sm:%s359]
                  %375 = vst [vmem:[%s367 + $0xc] sm:%s359] %v374
                $region87: #{tpu_custom_call.1} parent=74 // loop_footer
                  %s365 = sadd.s32 1, %s361
                $region88: #{tpu_custom_call.1} parent=74 // loop_footer_branch
                  %360 = sbr.rel target = $region84
                $region89: #{tpu_custom_call.1} parent=74 // loop_exit
                  _
              $region75: #{tpu_custom_call.1} parent=59 // pred_fallthru
                _
            $region60: #{tpu_custom_call.1} parent=55 // pred_fallthru
              _
            // Predicated region
            $region61: #{tpu_custom_call.1} parent=55 // pred_check
              _
            $region62: #{tpu_custom_call.1} parent=55 // pred_check_branch
              %329 = sbr.rel (0) target = $region64
            $region63: #{tpu_custom_call.1} parent=55 // pred_region
              %s331 = ssub.s32 16, 1
              loop: start=0, step=1, limit=1
              $region65: #{tpu_custom_call.1} parent=63 // loop_pre_header
                _
              $region66: #{tpu_custom_call.1} parent=63 // loop_header
                %s333 = sphi 0, %s337
                %p334 = scmp.ge.s32.totalorder %s333, 1
                %s338 = sphi %s323, %s323
                %s339 = sphi %s321, %s321
              $region67: #{tpu_custom_call.1} parent=63 // loop_header_branch
                %336 = sbr.rel (%p334) target = $region71
              $region68: #{tpu_custom_call.1} parent=63 // loop_body
                %v340 = vld [vmem:[%s338] sm:%s331]
                %341 = vst [vmem:[%s339] sm:%s331] %v340
                %v342 = vld [vmem:[%s338 + $0x8] sm:%s331]
                %343 = vst [vmem:[%s339 + $0x4] sm:%s331] %v342
                %v344 = vld [vmem:[%s338 + $0x10] sm:%s331]
                %345 = vst [vmem:[%s339 + $0x8] sm:%s331] %v344
                %v346 = vld [vmem:[%s338 + $0x18] sm:%s331]
                %347 = vst [vmem:[%s339 + $0xc] sm:%s331] %v346
              $region69: #{tpu_custom_call.1} parent=63 // loop_footer
                %s337 = sadd.s32 1, %s333
              $region70: #{tpu_custom_call.1} parent=63 // loop_footer_branch
                %332 = sbr.rel target = $region66
              $region71: #{tpu_custom_call.1} parent=63 // loop_exit
                _
            $region64: #{tpu_custom_call.1} parent=55 // pred_fallthru
              _
          $region56: #{tpu_custom_call.1} parent=51 // pred_fallthru
            _
          %376 = vnop
        $region52: #{tpu_custom_call.1} parent=47 // pred_fallthru
          _
        // Predicated region
        $region90: #{tpu_custom_call.1} parent=47 // pred_check
          %p377 = pneg %p245
        $region91: #{tpu_custom_call.1} parent=47 // pred_check_branch
          %379 = sbr.rel (%p377) target = $region93
        $region92: #{tpu_custom_call.1} parent=47 // pred_region
          %p380 = scmp.lt.s32.totalorder %s31, 1
          %s381 = scalar_select %p380, %s31, 1
          %s382 = scalar_lea.vmem %s11, %s381
        $region93: #{tpu_custom_call.1} parent=47 // pred_fallthru
          _
      $region48: #{tpu_custom_call.1} parent=5 // pred_fallthru
        _
      %p383 = scmp.le.s32.totalorder 1, %s31
      %p384 = scmp.lt.s32.totalorder %s31, 3
      %p385 = pnand %p383, %p384
      %p386 = pneg %p385
      // Predicated region
      $region94: #{tpu_custom_call.1} parent=5 // pred_check
        _
      $region95: #{tpu_custom_call.1} parent=5 // pred_check_branch
        %388 = sbr.rel (%p385) target = $region97
      $region96: #{tpu_custom_call.1} parent=5 // pred_region
        %s389 = ssub.s32 %s31, 1
        %s390 = sand.u32 %s212, 1
        %s391 = sand.u32 %s212, 1
        %s392 = smul.addr %s391, 16
        %s393 = scalar_lea.vmem [#allocation9], %s392
        // Predicated region
        $region98: #{tpu_custom_call.1} parent=96 // pred_check
          %p394 = pneg %p225
        $region99: #{tpu_custom_call.1} parent=96 // pred_check_branch
          %396 = sbr.rel (%p394) target = $region101
        $region100: #{tpu_custom_call.1} parent=96 // pred_region
          _
        $region101: #{tpu_custom_call.1} parent=96 // pred_fallthru
          _
        %p397 = pneg %p52
        %p398 = pneg %p49
        %p399 = pneg %p73
        %p400 = pneg %p70
        %p401 = pneg %p94
        %p402 = pneg %p91
        %p403 = pneg %p115
        %p404 = pneg %p112
        %p405 = pneg %p136
        %p406 = pneg %p133
        %p407 = pneg %p157
        %p408 = pneg %p154
        %p409 = pneg %p178
        %p410 = pneg %p175
        %p411 = pneg %p199
        %p412 = pneg %p196
        %s413 = sand.u32 %s212, 1
        %s414 = sand.u32 %s212, 1
        %s415 = smul.addr %s414, 16
        %s416 = scalar_lea.vmem [#allocation9], %s415
        %p417 = pneg %p225
        %p418 = pneg %p222
        %p419 = scmp.lt.s32.totalorder %s36, 1
        %s420 = scalar_select %p419, %s36, 1
        %s421 = scalar_lea.vmem %s11, %s420
        %p422 = pneg %p251
        %p423 = pneg %p248
        %p424 = pneg %p272
        %p425 = pneg %p269
        %p426 = scmp.lt.s32.totalorder %s36, 1
        %s427 = scalar_select %p426, %s36, 1
        %s428 = scalar_lea.vmem %s11, %s427
        %p430 = scmp.eq.s32.totalorder %s36, 0
        // Predicated region
        $region102: #{tpu_custom_call.1} parent=96 // pred_check
          %p431 = pneg %p430
        $region103: #{tpu_custom_call.1} parent=96 // pred_check_branch
          %433 = sbr.rel (%p431) target = $region105
        $region104: #{tpu_custom_call.1} parent=96 // pred_region
          %v434 = vld [vmem:[%s4] sm:$0xff]
          %v435 = vld [vmem:[%s4 + $0x8] sm:$0xff]
          %v436 = vld [vmem:[%s4 + $0x10] sm:$0xff]
          %v437 = vld [vmem:[%s4 + $0x18] sm:$0xff]
          %v438 = vld [vmem:[%s5] sm:$0xff]
          %v439 = vld [vmem:[%s5 + $0x8] sm:$0xff]
          %v440 = vld [vmem:[%s5 + $0x10] sm:$0xff]
          %v441 = vld [vmem:[%s5 + $0x18] sm:$0xff]
          %v442 = vld [vmem:[%s6] sm:$0x1]
          %v443 = vld [vmem:[%s7] sm:$0xff]
          %v444 = vld [vmem:[%s7 + $0x8] sm:$0xff]
          %v445 = vld [vmem:[%s7 + $0x10] sm:$0xff]
          %v446 = vld [vmem:[%s7 + $0x18] sm:$0xff]
          %v447 = vld [vmem:[%s8] sm:$0xff]
          %v448 = vld [vmem:[%s8 + $0x8] sm:$0xff]
          %v449 = vld [vmem:[%s8 + $0x10] sm:$0xff]
          %v450 = vld [vmem:[%s8 + $0x18] sm:$0xff]
          %v451 = vld [vmem:[%s9] sm:$0x1]
          %s452 = sld [smem:[#allocation7]]
          %s453 = scalar_lea.vmem %s2, %s452
          %v454 = vld [vmem:[%s453] sm:$0x1]
          %vm455 = vcmask 261120
          %v457 = vsel %vm455, %v454, 0
          %459 = vmatpush.msra.mxu0 0.0
          %460 = vmatpush.msra.mxu0 0.0
          %461 = vmatpush.msra.mxu0 0.0
          %462 = vmatpush.msra.mxu0 0.0
          %463 = vmatpush.msra.mxu0 0.0
          %464 = vmatpush.msra.mxu0 0.0
          %465 = vmatpush.msra.mxu0 0.0
          %466 = vmatpush.msra.mxu0 0.0
          %467 = vmatpush.msra.mxu0 0.0
          %468 = vmatpush.msra.mxu0 0.0
          %469 = vmatpush.msra.mxu0 0.0
          %470 = vmatpush.msra.mxu0 0.0
          %471 = vmatpush.msra.mxu0 %v437
          %472 = vmatpush.msra.mxu0 %v436
          %473 = vmatpush.msra.mxu0 %v435
          %474 = vmatpush.msra.mxu0 %v434
          %475 = vmatmul.f32.gmra.mxu0 %v457
          %v476 = vpop.f32.mrf.mxu0
          %v477 = vadd.f32 %v442, %v476
          %478 = vdwg.mxu0
          %s479 = sld [smem:[#allocation7 + $0x1]]
          %s480 = scalar_lea.vmem %s2, %s479
          %v481 = vld [vmem:[%s480] sm:$0x1]
          %v483 = vsel %vm455, %v481, 0
          %485 = vmatpush.msra.mxu0 0.0
          %486 = vmatpush.msra.mxu0 0.0
          %487 = vmatpush.msra.mxu0 0.0
          %488 = vmatpush.msra.mxu0 0.0
          %489 = vmatpush.msra.mxu0 0.0
          %490 = vmatpush.msra.mxu0 0.0
          %491 = vmatpush.msra.mxu0 0.0
          %492 = vmatpush.msra.mxu0 0.0
          %493 = vmatpush.msra.mxu0 0.0
          %494 = vmatpush.msra.mxu0 0.0
          %495 = vmatpush.msra.mxu0 0.0
          %496 = vmatpush.msra.mxu0 0.0
          %497 = vmatpush.msra.mxu0 %v437
          %498 = vmatpush.msra.mxu0 %v436
          %499 = vmatpush.msra.mxu0 %v435
          %500 = vmatpush.msra.mxu0 %v434
          %501 = vmatmul.f32.gmra.mxu0 %v483
          %v502 = vpop.f32.mrf.mxu0
          %v503 = vadd.f32 %v442, %v502
          %504 = vdwg.mxu0
          %s505 = sld [smem:[#allocation7 + $0x2]]
          %s506 = scalar_lea.vmem %s2, %s505
          %v507 = vld [vmem:[%s506] sm:$0x1]
          %v509 = vsel %vm455, %v507, 0
          %511 = vmatpush.msra.mxu0 0.0
          %512 = vmatpush.msra.mxu0 0.0
          %513 = vmatpush.msra.mxu0 0.0
          %514 = vmatpush.msra.mxu0 0.0
          %515 = vmatpush.msra.mxu0 0.0
          %516 = vmatpush.msra.mxu0 0.0
          %517 = vmatpush.msra.mxu0 0.0
          %518 = vmatpush.msra.mxu0 0.0
          %519 = vmatpush.msra.mxu0 0.0
          %520 = vmatpush.msra.mxu0 0.0
          %521 = vmatpush.msra.mxu0 0.0
          %522 = vmatpush.msra.mxu0 0.0
          %523 = vmatpush.msra.mxu0 %v437
          %524 = vmatpush.msra.mxu0 %v436
          %525 = vmatpush.msra.mxu0 %v435
          %526 = vmatpush.msra.mxu0 %v434
          %527 = vmatmul.f32.gmra.mxu0 %v509
          %v528 = vpop.f32.mrf.mxu0
          %v529 = vadd.f32 %v442, %v528
          %530 = vdwg.mxu0
          %s531 = sld [smem:[#allocation7 + $0x3]]
          %s532 = scalar_lea.vmem %s2, %s531
          %v533 = vld [vmem:[%s532] sm:$0x1]
          %v535 = vsel %vm455, %v533, 0
          %537 = vmatpush.msra.mxu0 0.0
          %538 = vmatpush.msra.mxu0 0.0
          %539 = vmatpush.msra.mxu0 0.0
          %540 = vmatpush.msra.mxu0 0.0
          %541 = vmatpush.msra.mxu0 0.0
          %542 = vmatpush.msra.mxu0 0.0
          %543 = vmatpush.msra.mxu0 0.0
          %544 = vmatpush.msra.mxu0 0.0
          %545 = vmatpush.msra.mxu0 0.0
          %546 = vmatpush.msra.mxu0 0.0
          %547 = vmatpush.msra.mxu0 0.0
          %548 = vmatpush.msra.mxu0 0.0
          %549 = vmatpush.msra.mxu0 %v437
          %550 = vmatpush.msra.mxu0 %v436
          %551 = vmatpush.msra.mxu0 %v435
          %552 = vmatpush.msra.mxu0 %v434
          %553 = vmatmul.f32.gmra.mxu0 %v535
          %v554 = vpop.f32.mrf.mxu0
          %v555 = vadd.f32 %v442, %v554
          %556 = vdwg.mxu0
          %s557 = sld [smem:[#allocation7 + $0x4]]
          %s558 = scalar_lea.vmem %s2, %s557
          %v559 = vld [vmem:[%s558] sm:$0x1]
          %v561 = vsel %vm455, %v559, 0
          %563 = vmatpush.msra.mxu0 0.0
          %564 = vmatpush.msra.mxu0 0.0
          %565 = vmatpush.msra.mxu0 0.0
          %566 = vmatpush.msra.mxu0 0.0
          %567 = vmatpush.msra.mxu0 0.0
          %568 = vmatpush.msra.mxu0 0.0
          %569 = vmatpush.msra.mxu0 0.0
          %570 = vmatpush.msra.mxu0 0.0
          %571 = vmatpush.msra.mxu0 0.0
          %572 = vmatpush.msra.mxu0 0.0
          %573 = vmatpush.msra.mxu0 0.0
          %574 = vmatpush.msra.mxu0 0.0
          %575 = vmatpush.msra.mxu0 %v437
          %576 = vmatpush.msra.mxu0 %v436
          %577 = vmatpush.msra.mxu0 %v435
          %578 = vmatpush.msra.mxu0 %v434
          %579 = vmatmul.f32.gmra.mxu0 %v561
          %v580 = vpop.f32.mrf.mxu0
          %v581 = vadd.f32 %v442, %v580
          %582 = vdwg.mxu0
          %s583 = sld [smem:[#allocation7 + $0x5]]
          %s584 = scalar_lea.vmem %s2, %s583
          %v585 = vld [vmem:[%s584] sm:$0x1]
          %v587 = vsel %vm455, %v585, 0
          %589 = vmatpush.msra.mxu0 0.0
          %590 = vmatpush.msra.mxu0 0.0
          %591 = vmatpush.msra.mxu0 0.0
          %592 = vmatpush.msra.mxu0 0.0
          %593 = vmatpush.msra.mxu0 0.0
          %594 = vmatpush.msra.mxu0 0.0
          %595 = vmatpush.msra.mxu0 0.0
          %596 = vmatpush.msra.mxu0 0.0
          %597 = vmatpush.msra.mxu0 0.0
          %598 = vmatpush.msra.mxu0 0.0
          %599 = vmatpush.msra.mxu0 0.0
          %600 = vmatpush.msra.mxu0 0.0
          %601 = vmatpush.msra.mxu0 %v437
          %602 = vmatpush.msra.mxu0 %v436
          %603 = vmatpush.msra.mxu0 %v435
          %604 = vmatpush.msra.mxu0 %v434
          %605 = vmatmul.f32.gmra.mxu0 %v587
          %v606 = vpop.f32.mrf.mxu0
          %v607 = vadd.f32 %v442, %v606
          %608 = vdwg.mxu0
          %s609 = sld [smem:[#allocation7 + $0x6]]
          %s610 = scalar_lea.vmem %s2, %s609
          %v611 = vld [vmem:[%s610] sm:$0x1]
          %v613 = vsel %vm455, %v611, 0
          %615 = vmatpush.msra.mxu0 0.0
          %616 = vmatpush.msra.mxu0 0.0
          %617 = vmatpush.msra.mxu0 0.0
          %618 = vmatpush.msra.mxu0 0.0
          %619 = vmatpush.msra.mxu0 0.0
          %620 = vmatpush.msra.mxu0 0.0
          %621 = vmatpush.msra.mxu0 0.0
          %622 = vmatpush.msra.mxu0 0.0
          %623 = vmatpush.msra.mxu0 0.0
          %624 = vmatpush.msra.mxu0 0.0
          %625 = vmatpush.msra.mxu0 0.0
          %626 = vmatpush.msra.mxu0 0.0
          %627 = vmatpush.msra.mxu0 %v437
          %628 = vmatpush.msra.mxu0 %v436
          %629 = vmatpush.msra.mxu0 %v435
          %630 = vmatpush.msra.mxu0 %v434
          %631 = vmatmul.f32.gmra.mxu0 %v613
          %v632 = vpop.f32.mrf.mxu0
          %v633 = vadd.f32 %v442, %v632
          %634 = vdwg.mxu0
          %s635 = sld [smem:[#allocation7 + $0x7]]
          %s636 = scalar_lea.vmem %s2, %s635
          %v637 = vld [vmem:[%s636] sm:$0x1]
          %v639 = vsel %vm455, %v637, 0
          %641 = vmatpush.msra.mxu0 0.0
          %642 = vmatpush.msra.mxu0 0.0
          %643 = vmatpush.msra.mxu0 0.0
          %644 = vmatpush.msra.mxu0 0.0
          %645 = vmatpush.msra.mxu0 0.0
          %646 = vmatpush.msra.mxu0 0.0
          %647 = vmatpush.msra.mxu0 0.0
          %648 = vmatpush.msra.mxu0 0.0
          %649 = vmatpush.msra.mxu0 0.0
          %650 = vmatpush.msra.mxu0 0.0
          %651 = vmatpush.msra.mxu0 0.0
          %652 = vmatpush.msra.mxu0 0.0
          %653 = vmatpush.msra.mxu0 %v437
          %654 = vmatpush.msra.mxu0 %v436
          %655 = vmatpush.msra.mxu0 %v435
          %656 = vmatpush.msra.mxu0 %v434
          %657 = vmatmul.f32.gmra.mxu0 %v639
          %v658 = vpop.f32.mrf.mxu0
          %v659 = vadd.f32 %v442, %v658
          %660 = vdwg.mxu0
          %s661 = sld [smem:[#allocation7 + $0x8]]
          %s662 = scalar_lea.vmem %s2, %s661
          %v663 = vld [vmem:[%s662] sm:$0x1]
          %v665 = vsel %vm455, %v663, 0
          %667 = vmatpush.msra.mxu0 0.0
          %668 = vmatpush.msra.mxu0 0.0
          %669 = vmatpush.msra.mxu0 0.0
          %670 = vmatpush.msra.mxu0 0.0
          %671 = vmatpush.msra.mxu0 0.0
          %672 = vmatpush.msra.mxu0 0.0
          %673 = vmatpush.msra.mxu0 0.0
          %674 = vmatpush.msra.mxu0 0.0
          %675 = vmatpush.msra.mxu0 0.0
          %676 = vmatpush.msra.mxu0 0.0
          %677 = vmatpush.msra.mxu0 0.0
          %678 = vmatpush.msra.mxu0 0.0
          %679 = vmatpush.msra.mxu0 %v437
          %680 = vmatpush.msra.mxu0 %v436
          %681 = vmatpush.msra.mxu0 %v435
          %682 = vmatpush.msra.mxu0 %v434
          %683 = vmatmul.f32.gmra.mxu0 %v665
          %v684 = vpop.f32.mrf.mxu0
          %v685 = vadd.f32 %v442, %v684
          %686 = vdwg.mxu0
          %s687 = sld [smem:[#allocation7 + $0x9]]
          %s688 = scalar_lea.vmem %s2, %s687
          %v689 = vld [vmem:[%s688] sm:$0x1]
          %v691 = vsel %vm455, %v689, 0
          %693 = vmatpush.msra.mxu0 0.0
          %694 = vmatpush.msra.mxu0 0.0
          %695 = vmatpush.msra.mxu0 0.0
          %696 = vmatpush.msra.mxu0 0.0
          %697 = vmatpush.msra.mxu0 0.0
          %698 = vmatpush.msra.mxu0 0.0
          %699 = vmatpush.msra.mxu0 0.0
          %700 = vmatpush.msra.mxu0 0.0
          %701 = vmatpush.msra.mxu0 0.0
          %702 = vmatpush.msra.mxu0 0.0
          %703 = vmatpush.msra.mxu0 0.0
          %704 = vmatpush.msra.mxu0 0.0
          %705 = vmatpush.msra.mxu0 %v437
          %706 = vmatpush.msra.mxu0 %v436
          %707 = vmatpush.msra.mxu0 %v435
          %708 = vmatpush.msra.mxu0 %v434
          %709 = vmatmul.f32.gmra.mxu0 %v691
          %v710 = vpop.f32.mrf.mxu0
          %v711 = vadd.f32 %v442, %v710
          %712 = vdwg.mxu0
          %s713 = sld [smem:[#allocation8]]
          %s714 = scalar_lea.vmem %s3, %s713
          %v715 = vld [vmem:[%s714] sm:$0x1]
          %v717 = vsel %vm455, %v715, 0
          %719 = vmatpush.msra.mxu0 0.0
          %720 = vmatpush.msra.mxu0 0.0
          %721 = vmatpush.msra.mxu0 0.0
          %722 = vmatpush.msra.mxu0 0.0
          %723 = vmatpush.msra.mxu0 0.0
          %724 = vmatpush.msra.mxu0 0.0
          %725 = vmatpush.msra.mxu0 0.0
          %726 = vmatpush.msra.mxu0 0.0
          %727 = vmatpush.msra.mxu0 0.0
          %728 = vmatpush.msra.mxu0 0.0
          %729 = vmatpush.msra.mxu0 0.0
          %730 = vmatpush.msra.mxu0 0.0
          %731 = vmatpush.msra.mxu0 %v446
          %732 = vmatpush.msra.mxu0 %v445
          %733 = vmatpush.msra.mxu0 %v444
          %734 = vmatpush.msra.mxu0 %v443
          %735 = vmatmul.f32.gmra.mxu0 %v717
          %v736 = vpop.f32.mrf.mxu0
          %v737 = vadd.f32 %v451, %v736
          %738 = vdwg.mxu0
          %s739 = sld [smem:[#allocation8 + $0x1]]
          %s740 = scalar_lea.vmem %s3, %s739
          %v741 = vld [vmem:[%s740] sm:$0x1]
          %v743 = vsel %vm455, %v741, 0
          %745 = vmatpush.msra.mxu0 0.0
          %746 = vmatpush.msra.mxu0 0.0
          %747 = vmatpush.msra.mxu0 0.0
          %748 = vmatpush.msra.mxu0 0.0
          %749 = vmatpush.msra.mxu0 0.0
          %750 = vmatpush.msra.mxu0 0.0
          %751 = vmatpush.msra.mxu0 0.0
          %752 = vmatpush.msra.mxu0 0.0
          %753 = vmatpush.msra.mxu0 0.0
          %754 = vmatpush.msra.mxu0 0.0
          %755 = vmatpush.msra.mxu0 0.0
          %756 = vmatpush.msra.mxu0 0.0
          %757 = vmatpush.msra.mxu0 %v446
          %758 = vmatpush.msra.mxu0 %v445
          %759 = vmatpush.msra.mxu0 %v444
          %760 = vmatpush.msra.mxu0 %v443
          %761 = vmatmul.f32.gmra.mxu0 %v743
          %v762 = vpop.f32.mrf.mxu0
          %v763 = vadd.f32 %v451, %v762
          %764 = vdwg.mxu0
          %s765 = sld [smem:[#allocation8 + $0x2]]
          %s766 = scalar_lea.vmem %s3, %s765
          %v767 = vld [vmem:[%s766] sm:$0x1]
          %v769 = vsel %vm455, %v767, 0
          %771 = vmatpush.msra.mxu0 0.0
          %772 = vmatpush.msra.mxu0 0.0
          %773 = vmatpush.msra.mxu0 0.0
          %774 = vmatpush.msra.mxu0 0.0
          %775 = vmatpush.msra.mxu0 0.0
          %776 = vmatpush.msra.mxu0 0.0
          %777 = vmatpush.msra.mxu0 0.0
          %778 = vmatpush.msra.mxu0 0.0
          %779 = vmatpush.msra.mxu0 0.0
          %780 = vmatpush.msra.mxu0 0.0
          %781 = vmatpush.msra.mxu0 0.0
          %782 = vmatpush.msra.mxu0 0.0
          %783 = vmatpush.msra.mxu0 %v446
          %784 = vmatpush.msra.mxu0 %v445
          %785 = vmatpush.msra.mxu0 %v444
          %786 = vmatpush.msra.mxu0 %v443
          %787 = vmatmul.f32.gmra.mxu0 %v769
          %v788 = vpop.f32.mrf.mxu0
          %v789 = vadd.f32 %v451, %v788
          %790 = vdwg.mxu0
          %s791 = sld [smem:[#allocation8 + $0x3]]
          %s792 = scalar_lea.vmem %s3, %s791
          %v793 = vld [vmem:[%s792] sm:$0x1]
          %v795 = vsel %vm455, %v793, 0
          %797 = vmatpush.msra.mxu0 0.0
          %798 = vmatpush.msra.mxu0 0.0
          %799 = vmatpush.msra.mxu0 0.0
          %800 = vmatpush.msra.mxu0 0.0
          %801 = vmatpush.msra.mxu0 0.0
          %802 = vmatpush.msra.mxu0 0.0
          %803 = vmatpush.msra.mxu0 0.0
          %804 = vmatpush.msra.mxu0 0.0
          %805 = vmatpush.msra.mxu0 0.0
          %806 = vmatpush.msra.mxu0 0.0
          %807 = vmatpush.msra.mxu0 0.0
          %808 = vmatpush.msra.mxu0 0.0
          %809 = vmatpush.msra.mxu0 %v446
          %810 = vmatpush.msra.mxu0 %v445
          %811 = vmatpush.msra.mxu0 %v444
          %812 = vmatpush.msra.mxu0 %v443
          %813 = vmatmul.f32.gmra.mxu0 %v795
          %v814 = vpop.f32.mrf.mxu0
          %v815 = vadd.f32 %v451, %v814
          %816 = vdwg.mxu0
          %s817 = sld [smem:[#allocation8 + $0x4]]
          %s818 = scalar_lea.vmem %s3, %s817
          %v819 = vld [vmem:[%s818] sm:$0x1]
          %v821 = vsel %vm455, %v819, 0
          %823 = vmatpush.msra.mxu0 0.0
          %824 = vmatpush.msra.mxu0 0.0
          %825 = vmatpush.msra.mxu0 0.0
          %826 = vmatpush.msra.mxu0 0.0
          %827 = vmatpush.msra.mxu0 0.0
          %828 = vmatpush.msra.mxu0 0.0
          %829 = vmatpush.msra.mxu0 0.0
          %830 = vmatpush.msra.mxu0 0.0
          %831 = vmatpush.msra.mxu0 0.0
          %832 = vmatpush.msra.mxu0 0.0
          %833 = vmatpush.msra.mxu0 0.0
          %834 = vmatpush.msra.mxu0 0.0
          %835 = vmatpush.msra.mxu0 %v446
          %836 = vmatpush.msra.mxu0 %v445
          %837 = vmatpush.msra.mxu0 %v444
          %838 = vmatpush.msra.mxu0 %v443
          %839 = vmatmul.f32.gmra.mxu0 %v821
          %v840 = vpop.f32.mrf.mxu0
          %v841 = vadd.f32 %v451, %v840
          %842 = vdwg.mxu0
          %s843 = sld [smem:[#allocation8 + $0x5]]
          %s844 = scalar_lea.vmem %s3, %s843
          %v845 = vld [vmem:[%s844] sm:$0x1]
          %v847 = vsel %vm455, %v845, 0
          %849 = vmatpush.msra.mxu0 0.0
          %850 = vmatpush.msra.mxu0 0.0
          %851 = vmatpush.msra.mxu0 0.0
          %852 = vmatpush.msra.mxu0 0.0
          %853 = vmatpush.msra.mxu0 0.0
          %854 = vmatpush.msra.mxu0 0.0
          %855 = vmatpush.msra.mxu0 0.0
          %856 = vmatpush.msra.mxu0 0.0
          %857 = vmatpush.msra.mxu0 0.0
          %858 = vmatpush.msra.mxu0 0.0
          %859 = vmatpush.msra.mxu0 0.0
          %860 = vmatpush.msra.mxu0 0.0
          %861 = vmatpush.msra.mxu0 %v446
          %862 = vmatpush.msra.mxu0 %v445
          %863 = vmatpush.msra.mxu0 %v444
          %864 = vmatpush.msra.mxu0 %v443
          %865 = vmatmul.f32.gmra.mxu0 %v847
          %v866 = vpop.f32.mrf.mxu0
          %v867 = vadd.f32 %v451, %v866
          %868 = vdwg.mxu0
          %v870 = vsel %vm455, 0.0, 0
          %872 = vmatpush.msra.mxu0 0.0
          %873 = vmatpush.msra.mxu0 0.0
          %874 = vmatpush.msra.mxu0 0.0
          %875 = vmatpush.msra.mxu0 0.0
          %876 = vmatpush.msra.mxu0 0.0
          %877 = vmatpush.msra.mxu0 0.0
          %878 = vmatpush.msra.mxu0 0.0
          %879 = vmatpush.msra.mxu0 0.0
          %880 = vmatpush.msra.mxu0 0.0
          %881 = vmatpush.msra.mxu0 0.0
          %882 = vmatpush.msra.mxu0 0.0
          %883 = vmatpush.msra.mxu0 0.0
          %884 = vmatpush.msra.mxu0 %v441
          %885 = vmatpush.msra.mxu0 %v440
          %886 = vmatpush.msra.mxu0 %v439
          %887 = vmatpush.msra.mxu0 %v438
          %888 = vmatmul.f32.gmra.mxu0 %v870
          %v889 = vpop.f32.mrf.mxu0
          %v890 = vadd.f32 0.0, %v889
          %891 = vdwg.mxu0
          %v892 = vadd.f32 %v477, %v890
          %v893 = vxor.u32 %v892, 2147483648
          %v894 = vmul.f32 %v893, 1.442695
          %v895 = vpow.pop %v894
          %v896 = vadd.f32 %v895, 1.0
          %v897 = vrcp.pop %v896
          %v898 = vmul.f32 %v896, %v897
          %v899 = vsub.f32 1.0, %v898
          %v900 = vmul.f32 %v897, %v899
          %v901 = vadd.f32 %v897, %v900
          %vm902 = vweird.f32 %v896
          %vm903 = vweird.f32 %v897
          %vm904 = vmor %vm902, %vm903
          %v905 = vsel %vm904, %v897, %v901
          %v906 = vand.u32 2147483647, %v896
          %vm907 = vcmp.eq.f32.partialorder %v906, 8.507059e+37
          %v908 = vand.u32 %v896, 2147483648
          %v909 = vor.u32 1.1754944e-38, %v908
          %v910 = vsel %vm907, %v909, %v905
          %v911 = vmul.f32 1.0, %v910
          %v912 = vtanh.pop %v892
          %v913 = vmul.f32 %v911, 0.0
          %915 = vrot.lane.b32.xlu0 %v912, 64
          %v916 = vpop.permute.xlu0 %915
          %v918 = vmul.f32 %v911, %v916
          %920 = vrot.lane.b32.xlu0 %v918, 32
          %v921 = vpop.permute.xlu0 %920
          %v923 = vadd.f32 %v913, %v921
          %v924 = vtanh.pop %v923
          %926 = vrot.lane.b32.xlu0 %v924, 64
          %v927 = vpop.permute.xlu0 %926
          %v929 = vmul.f32 %v911, %v927
          %931 = vrot.lane.b32.xlu0 %v929, 32
          %v932 = vpop.permute.xlu0 %931
          %v933 = vsel %vm455, %v932, 0
          %935 = vmatpush.msra.mxu0 0.0
          %936 = vmatpush.msra.mxu0 0.0
          %937 = vmatpush.msra.mxu0 0.0
          %938 = vmatpush.msra.mxu0 0.0
          %939 = vmatpush.msra.mxu0 0.0
          %940 = vmatpush.msra.mxu0 0.0
          %941 = vmatpush.msra.mxu0 0.0
          %942 = vmatpush.msra.mxu0 0.0
          %943 = vmatpush.msra.mxu0 0.0
          %944 = vmatpush.msra.mxu0 0.0
          %945 = vmatpush.msra.mxu0 0.0
          %946 = vmatpush.msra.mxu0 0.0
          %947 = vmatpush.msra.mxu0 %v441
          %948 = vmatpush.msra.mxu0 %v440
          %949 = vmatpush.msra.mxu0 %v439
          %950 = vmatpush.msra.mxu0 %v438
          %951 = vmatmul.f32.gmra.mxu0 %v933
          %v952 = vpop.f32.mrf.mxu0
          %v953 = vadd.f32 0.0, %v952
          %954 = vdwg.mxu0
          %v955 = vadd.f32 %v503, %v953
          %v956 = vxor.u32 %v955, 2147483648
          %v957 = vmul.f32 %v956, 1.442695
          %v958 = vpow.pop %v957
          %v959 = vadd.f32 %v958, 1.0
          %v960 = vrcp.pop %v959
          %v961 = vmul.f32 %v959, %v960
          %v962 = vsub.f32 1.0, %v961
          %v963 = vmul.f32 %v960, %v962
          %v964 = vadd.f32 %v960, %v963
          %vm965 = vweird.f32 %v959
          %vm966 = vweird.f32 %v960
          %vm967 = vmor %vm965, %vm966
          %v968 = vsel %vm967, %v960, %v964
          %v969 = vand.u32 2147483647, %v959
          %vm970 = vcmp.eq.f32.partialorder %v969, 8.507059e+37
          %v971 = vand.u32 %v959, 2147483648
          %v972 = vor.u32 1.1754944e-38, %v971
          %v973 = vsel %vm970, %v972, %v968
          %v974 = vmul.f32 1.0, %v973
          %v975 = vtanh.pop %v955
          %v976 = vmul.f32 %v974, %v923
          %978 = vrot.lane.b32.xlu0 %v975, 64
          %v979 = vpop.permute.xlu0 %978
          %v981 = vmul.f32 %v974, %v979
          %983 = vrot.lane.b32.xlu0 %v981, 32
          %v984 = vpop.permute.xlu0 %983
          %v986 = vadd.f32 %v976, %v984
          %v987 = vtanh.pop %v986
          %989 = vrot.lane.b32.xlu0 %v987, 64
          %v990 = vpop.permute.xlu0 %989
          %v992 = vmul.f32 %v974, %v990
          %994 = vrot.lane.b32.xlu0 %v992, 32
          %v995 = vpop.permute.xlu0 %994
          %v996 = vsel %vm455, %v995, 0
          %998 = vmatpush.msra.mxu0 0.0
          %999 = vmatpush.msra.mxu0 0.0
          %1000 = vmatpush.msra.mxu0 0.0
          %1001 = vmatpush.msra.mxu0 0.0
          %1002 = vmatpush.msra.mxu0 0.0
          %1003 = vmatpush.msra.mxu0 0.0
          %1004 = vmatpush.msra.mxu0 0.0
          %1005 = vmatpush.msra.mxu0 0.0
          %1006 = vmatpush.msra.mxu0 0.0
          %1007 = vmatpush.msra.mxu0 0.0
          %1008 = vmatpush.msra.mxu0 0.0
          %1009 = vmatpush.msra.mxu0 0.0
          %1010 = vmatpush.msra.mxu0 %v441
          %1011 = vmatpush.msra.mxu0 %v440
          %1012 = vmatpush.msra.mxu0 %v439
          %1013 = vmatpush.msra.mxu0 %v438
          %1014 = vmatmul.f32.gmra.mxu0 %v996
          %v1015 = vpop.f32.mrf.mxu0
          %v1016 = vadd.f32 0.0, %v1015
          %1017 = vdwg.mxu0
          %v1018 = vadd.f32 %v529, %v1016
          %v1019 = vxor.u32 %v1018, 2147483648
          %v1020 = vmul.f32 %v1019, 1.442695
          %v1021 = vpow.pop %v1020
          %v1022 = vadd.f32 %v1021, 1.0
          %v1023 = vrcp.pop %v1022
          %v1024 = vmul.f32 %v1022, %v1023
          %v1025 = vsub.f32 1.0, %v1024
          %v1026 = vmul.f32 %v1023, %v1025
          %v1027 = vadd.f32 %v1023, %v1026
          %vm1028 = vweird.f32 %v1022
          %vm1029 = vweird.f32 %v1023
          %vm1030 = vmor %vm1028, %vm1029
          %v1031 = vsel %vm1030, %v1023, %v1027
          %v1032 = vand.u32 2147483647, %v1022
          %vm1033 = vcmp.eq.f32.partialorder %v1032, 8.507059e+37
          %v1034 = vand.u32 %v1022, 2147483648
          %v1035 = vor.u32 1.1754944e-38, %v1034
          %v1036 = vsel %vm1033, %v1035, %v1031
          %v1037 = vmul.f32 1.0, %v1036
          %v1038 = vtanh.pop %v1018
          %v1039 = vmul.f32 %v1037, %v986
          %1041 = vrot.lane.b32.xlu0 %v1038, 64
          %v1042 = vpop.permute.xlu0 %1041
          %v1044 = vmul.f32 %v1037, %v1042
          %1046 = vrot.lane.b32.xlu0 %v1044, 32
          %v1047 = vpop.permute.xlu0 %1046
          %v1049 = vadd.f32 %v1039, %v1047
          %v1050 = vtanh.pop %v1049
          %1052 = vrot.lane.b32.xlu0 %v1050, 64
          %v1053 = vpop.permute.xlu0 %1052
          %v1055 = vmul.f32 %v1037, %v1053
          %1057 = vrot.lane.b32.xlu0 %v1055, 32
          %v1058 = vpop.permute.xlu0 %1057
          %v1059 = vsel %vm455, %v1058, 0
          %1061 = vmatpush.msra.mxu0 0.0
          %1062 = vmatpush.msra.mxu0 0.0
          %1063 = vmatpush.msra.mxu0 0.0
          %1064 = vmatpush.msra.mxu0 0.0
          %1065 = vmatpush.msra.mxu0 0.0
          %1066 = vmatpush.msra.mxu0 0.0
          %1067 = vmatpush.msra.mxu0 0.0
          %1068 = vmatpush.msra.mxu0 0.0
          %1069 = vmatpush.msra.mxu0 0.0
          %1070 = vmatpush.msra.mxu0 0.0
          %1071 = vmatpush.msra.mxu0 0.0
          %1072 = vmatpush.msra.mxu0 0.0
          %1073 = vmatpush.msra.mxu0 %v441
          %1074 = vmatpush.msra.mxu0 %v440
          %1075 = vmatpush.msra.mxu0 %v439
          %1076 = vmatpush.msra.mxu0 %v438
          %1077 = vmatmul.f32.gmra.mxu0 %v1059
          %v1078 = vpop.f32.mrf.mxu0
          %v1079 = vadd.f32 0.0, %v1078
          %1080 = vdwg.mxu0
          %v1081 = vadd.f32 %v555, %v1079
          %v1082 = vxor.u32 %v1081, 2147483648
          %v1083 = vmul.f32 %v1082, 1.442695
          %v1084 = vpow.pop %v1083
          %v1085 = vadd.f32 %v1084, 1.0
          %v1086 = vrcp.pop %v1085
          %v1087 = vmul.f32 %v1085, %v1086
          %v1088 = vsub.f32 1.0, %v1087
          %v1089 = vmul.f32 %v1086, %v1088
          %v1090 = vadd.f32 %v1086, %v1089
          %vm1091 = vweird.f32 %v1085
          %vm1092 = vweird.f32 %v1086
          %vm1093 = vmor %vm1091, %vm1092
          %v1094 = vsel %vm1093, %v1086, %v1090
          %v1095 = vand.u32 2147483647, %v1085
          %vm1096 = vcmp.eq.f32.partialorder %v1095, 8.507059e+37
          %v1097 = vand.u32 %v1085, 2147483648
          %v1098 = vor.u32 1.1754944e-38, %v1097
          %v1099 = vsel %vm1096, %v1098, %v1094
          %v1100 = vmul.f32 1.0, %v1099
          %v1101 = vtanh.pop %v1081
          %v1102 = vmul.f32 %v1100, %v1049
          %1104 = vrot.lane.b32.xlu0 %v1101, 64
          %v1105 = vpop.permute.xlu0 %1104
          %v1107 = vmul.f32 %v1100, %v1105
          %1109 = vrot.lane.b32.xlu0 %v1107, 32
          %v1110 = vpop.permute.xlu0 %1109
          %v1112 = vadd.f32 %v1102, %v1110
          %v1113 = vtanh.pop %v1112
          %1115 = vrot.lane.b32.xlu0 %v1113, 64
          %v1116 = vpop.permute.xlu0 %1115
          %v1118 = vmul.f32 %v1100, %v1116
          %1120 = vrot.lane.b32.xlu0 %v1118, 32
          %v1121 = vpop.permute.xlu0 %1120
          %v1122 = vsel %vm455, %v1121, 0
          %1124 = vmatpush.msra.mxu0 0.0
          %1125 = vmatpush.msra.mxu0 0.0
          %1126 = vmatpush.msra.mxu0 0.0
          %1127 = vmatpush.msra.mxu0 0.0
          %1128 = vmatpush.msra.mxu0 0.0
          %1129 = vmatpush.msra.mxu0 0.0
          %1130 = vmatpush.msra.mxu0 0.0
          %1131 = vmatpush.msra.mxu0 0.0
          %1132 = vmatpush.msra.mxu0 0.0
          %1133 = vmatpush.msra.mxu0 0.0
          %1134 = vmatpush.msra.mxu0 0.0
          %1135 = vmatpush.msra.mxu0 0.0
          %1136 = vmatpush.msra.mxu0 %v441
          %1137 = vmatpush.msra.mxu0 %v440
          %1138 = vmatpush.msra.mxu0 %v439
          %1139 = vmatpush.msra.mxu0 %v438
          %1140 = vmatmul.f32.gmra.mxu0 %v1122
          %v1141 = vpop.f32.mrf.mxu0
          %v1142 = vadd.f32 0.0, %v1141
          %1143 = vdwg.mxu0
          %v1144 = vadd.f32 %v581, %v1142
          %v1145 = vxor.u32 %v1144, 2147483648
          %v1146 = vmul.f32 %v1145, 1.442695
          %v1147 = vpow.pop %v1146
          %v1148 = vadd.f32 %v1147, 1.0
          %v1149 = vrcp.pop %v1148
          %v1150 = vmul.f32 %v1148, %v1149
          %v1151 = vsub.f32 1.0, %v1150
          %v1152 = vmul.f32 %v1149, %v1151
          %v1153 = vadd.f32 %v1149, %v1152
          %vm1154 = vweird.f32 %v1148
          %vm1155 = vweird.f32 %v1149
          %vm1156 = vmor %vm1154, %vm1155
          %v1157 = vsel %vm1156, %v1149, %v1153
          %v1158 = vand.u32 2147483647, %v1148
          %vm1159 = vcmp.eq.f32.partialorder %v1158, 8.507059e+37
          %v1160 = vand.u32 %v1148, 2147483648
          %v1161 = vor.u32 1.1754944e-38, %v1160
          %v1162 = vsel %vm1159, %v1161, %v1157
          %v1163 = vmul.f32 1.0, %v1162
          %v1164 = vtanh.pop %v1144
          %v1165 = vmul.f32 %v1163, %v1112
          %1167 = vrot.lane.b32.xlu0 %v1164, 64
          %v1168 = vpop.permute.xlu0 %1167
          %v1170 = vmul.f32 %v1163, %v1168
          %1172 = vrot.lane.b32.xlu0 %v1170, 32
          %v1173 = vpop.permute.xlu0 %1172
          %v1175 = vadd.f32 %v1165, %v1173
          %v1176 = vtanh.pop %v1175
          %1178 = vrot.lane.b32.xlu0 %v1176, 64
          %v1179 = vpop.permute.xlu0 %1178
          %v1181 = vmul.f32 %v1163, %v1179
          %1183 = vrot.lane.b32.xlu0 %v1181, 32
          %v1184 = vpop.permute.xlu0 %1183
          %v1185 = vsel %vm455, %v1184, 0
          %1187 = vmatpush.msra.mxu0 0.0
          %1188 = vmatpush.msra.mxu0 0.0
          %1189 = vmatpush.msra.mxu0 0.0
          %1190 = vmatpush.msra.mxu0 0.0
          %1191 = vmatpush.msra.mxu0 0.0
          %1192 = vmatpush.msra.mxu0 0.0
          %1193 = vmatpush.msra.mxu0 0.0
          %1194 = vmatpush.msra.mxu0 0.0
          %1195 = vmatpush.msra.mxu0 0.0
          %1196 = vmatpush.msra.mxu0 0.0
          %1197 = vmatpush.msra.mxu0 0.0
          %1198 = vmatpush.msra.mxu0 0.0
          %1199 = vmatpush.msra.mxu0 %v441
          %1200 = vmatpush.msra.mxu0 %v440
          %1201 = vmatpush.msra.mxu0 %v439
          %1202 = vmatpush.msra.mxu0 %v438
          %1203 = vmatmul.f32.gmra.mxu0 %v1185
          %v1204 = vpop.f32.mrf.mxu0
          %v1205 = vadd.f32 0.0, %v1204
          %1206 = vdwg.mxu0
          %v1207 = vadd.f32 %v607, %v1205
          %v1208 = vxor.u32 %v1207, 2147483648
          %v1209 = vmul.f32 %v1208, 1.442695
          %v1210 = vpow.pop %v1209
          %v1211 = vadd.f32 %v1210, 1.0
          %v1212 = vrcp.pop %v1211
          %v1213 = vmul.f32 %v1211, %v1212
          %v1214 = vsub.f32 1.0, %v1213
          %v1215 = vmul.f32 %v1212, %v1214
          %v1216 = vadd.f32 %v1212, %v1215
          %vm1217 = vweird.f32 %v1211
          %vm1218 = vweird.f32 %v1212
          %vm1219 = vmor %vm1217, %vm1218
          %v1220 = vsel %vm1219, %v1212, %v1216
          %v1221 = vand.u32 2147483647, %v1211
          %vm1222 = vcmp.eq.f32.partialorder %v1221, 8.507059e+37
          %v1223 = vand.u32 %v1211, 2147483648
          %v1224 = vor.u32 1.1754944e-38, %v1223
          %v1225 = vsel %vm1222, %v1224, %v1220
          %v1226 = vmul.f32 1.0, %v1225
          %v1227 = vtanh.pop %v1207
          %v1228 = vmul.f32 %v1226, %v1175
          %1230 = vrot.lane.b32.xlu0 %v1227, 64
          %v1231 = vpop.permute.xlu0 %1230
          %v1233 = vmul.f32 %v1226, %v1231
          %1235 = vrot.lane.b32.xlu0 %v1233, 32
          %v1236 = vpop.permute.xlu0 %1235
          %v1238 = vadd.f32 %v1228, %v1236
          %v1239 = vtanh.pop %v1238
          %1241 = vrot.lane.b32.xlu0 %v1239, 64
          %v1242 = vpop.permute.xlu0 %1241
          %v1244 = vmul.f32 %v1226, %v1242
          %1246 = vrot.lane.b32.xlu0 %v1244, 32
          %v1247 = vpop.permute.xlu0 %1246
          %v1248 = vsel %vm455, %v1247, 0
          %1250 = vmatpush.msra.mxu0 0.0
          %1251 = vmatpush.msra.mxu0 0.0
          %1252 = vmatpush.msra.mxu0 0.0
          %1253 = vmatpush.msra.mxu0 0.0
          %1254 = vmatpush.msra.mxu0 0.0
          %1255 = vmatpush.msra.mxu0 0.0
          %1256 = vmatpush.msra.mxu0 0.0
          %1257 = vmatpush.msra.mxu0 0.0
          %1258 = vmatpush.msra.mxu0 0.0
          %1259 = vmatpush.msra.mxu0 0.0
          %1260 = vmatpush.msra.mxu0 0.0
          %1261 = vmatpush.msra.mxu0 0.0
          %1262 = vmatpush.msra.mxu0 %v441
          %1263 = vmatpush.msra.mxu0 %v440
          %1264 = vmatpush.msra.mxu0 %v439
          %1265 = vmatpush.msra.mxu0 %v438
          %1266 = vmatmul.f32.gmra.mxu0 %v1248
          %v1267 = vpop.f32.mrf.mxu0
          %v1268 = vadd.f32 0.0, %v1267
          %1269 = vdwg.mxu0
          %v1270 = vadd.f32 %v633, %v1268
          %v1271 = vxor.u32 %v1270, 2147483648
          %v1272 = vmul.f32 %v1271, 1.442695
          %v1273 = vpow.pop %v1272
          %v1274 = vadd.f32 %v1273, 1.0
          %v1275 = vrcp.pop %v1274
          %v1276 = vmul.f32 %v1274, %v1275
          %v1277 = vsub.f32 1.0, %v1276
          %v1278 = vmul.f32 %v1275, %v1277
          %v1279 = vadd.f32 %v1275, %v1278
          %vm1280 = vweird.f32 %v1274
          %vm1281 = vweird.f32 %v1275
          %vm1282 = vmor %vm1280, %vm1281
          %v1283 = vsel %vm1282, %v1275, %v1279
          %v1284 = vand.u32 2147483647, %v1274
          %vm1285 = vcmp.eq.f32.partialorder %v1284, 8.507059e+37
          %v1286 = vand.u32 %v1274, 2147483648
          %v1287 = vor.u32 1.1754944e-38, %v1286
          %v1288 = vsel %vm1285, %v1287, %v1283
          %v1289 = vmul.f32 1.0, %v1288
          %v1290 = vtanh.pop %v1270
          %v1291 = vmul.f32 %v1289, %v1238
          %1293 = vrot.lane.b32.xlu0 %v1290, 64
          %v1294 = vpop.permute.xlu0 %1293
          %v1296 = vmul.f32 %v1289, %v1294
          %1298 = vrot.lane.b32.xlu0 %v1296, 32
          %v1299 = vpop.permute.xlu0 %1298
          %v1301 = vadd.f32 %v1291, %v1299
          %v1302 = vtanh.pop %v1301
          %1304 = vrot.lane.b32.xlu0 %v1302, 64
          %v1305 = vpop.permute.xlu0 %1304
          %v1307 = vmul.f32 %v1289, %v1305
          %1309 = vrot.lane.b32.xlu0 %v1307, 32
          %v1310 = vpop.permute.xlu0 %1309
          %v1311 = vsel %vm455, %v1310, 0
          %1313 = vmatpush.msra.mxu0 0.0
          %1314 = vmatpush.msra.mxu0 0.0
          %1315 = vmatpush.msra.mxu0 0.0
          %1316 = vmatpush.msra.mxu0 0.0
          %1317 = vmatpush.msra.mxu0 0.0
          %1318 = vmatpush.msra.mxu0 0.0
          %1319 = vmatpush.msra.mxu0 0.0
          %1320 = vmatpush.msra.mxu0 0.0
          %1321 = vmatpush.msra.mxu0 0.0
          %1322 = vmatpush.msra.mxu0 0.0
          %1323 = vmatpush.msra.mxu0 0.0
          %1324 = vmatpush.msra.mxu0 0.0
          %1325 = vmatpush.msra.mxu0 %v441
          %1326 = vmatpush.msra.mxu0 %v440
          %1327 = vmatpush.msra.mxu0 %v439
          %1328 = vmatpush.msra.mxu0 %v438
          %1329 = vmatmul.f32.gmra.mxu0 %v1311
          %v1330 = vpop.f32.mrf.mxu0
          %v1331 = vadd.f32 0.0, %v1330
          %1332 = vdwg.mxu0
          %v1333 = vadd.f32 %v659, %v1331
          %v1334 = vxor.u32 %v1333, 2147483648
          %v1335 = vmul.f32 %v1334, 1.442695
          %v1336 = vpow.pop %v1335
          %v1337 = vadd.f32 %v1336, 1.0
          %v1338 = vrcp.pop %v1337
          %v1339 = vmul.f32 %v1337, %v1338
          %v1340 = vsub.f32 1.0, %v1339
          %v1341 = vmul.f32 %v1338, %v1340
          %v1342 = vadd.f32 %v1338, %v1341
          %vm1343 = vweird.f32 %v1337
          %vm1344 = vweird.f32 %v1338
          %vm1345 = vmor %vm1343, %vm1344
          %v1346 = vsel %vm1345, %v1338, %v1342
          %v1347 = vand.u32 2147483647, %v1337
          %vm1348 = vcmp.eq.f32.partialorder %v1347, 8.507059e+37
          %v1349 = vand.u32 %v1337, 2147483648
          %v1350 = vor.u32 1.1754944e-38, %v1349
          %v1351 = vsel %vm1348, %v1350, %v1346
          %v1352 = vmul.f32 1.0, %v1351
          %v1353 = vtanh.pop %v1333
          %v1354 = vmul.f32 %v1352, %v1301
          %1356 = vrot.lane.b32.xlu0 %v1353, 64
          %v1357 = vpop.permute.xlu0 %1356
          %v1359 = vmul.f32 %v1352, %v1357
          %1361 = vrot.lane.b32.xlu0 %v1359, 32
          %v1362 = vpop.permute.xlu0 %1361
          %v1364 = vadd.f32 %v1354, %v1362
          %v1365 = vtanh.pop %v1364
          %1367 = vrot.lane.b32.xlu0 %v1365, 64
          %v1368 = vpop.permute.xlu0 %1367
          %v1370 = vmul.f32 %v1352, %v1368
          %1372 = vrot.lane.b32.xlu0 %v1370, 32
          %v1373 = vpop.permute.xlu0 %1372
          %v1374 = vsel %vm455, %v1373, 0
          %1376 = vmatpush.msra.mxu0 0.0
          %1377 = vmatpush.msra.mxu0 0.0
          %1378 = vmatpush.msra.mxu0 0.0
          %1379 = vmatpush.msra.mxu0 0.0
          %1380 = vmatpush.msra.mxu0 0.0
          %1381 = vmatpush.msra.mxu0 0.0
          %1382 = vmatpush.msra.mxu0 0.0
          %1383 = vmatpush.msra.mxu0 0.0
          %1384 = vmatpush.msra.mxu0 0.0
          %1385 = vmatpush.msra.mxu0 0.0
          %1386 = vmatpush.msra.mxu0 0.0
          %1387 = vmatpush.msra.mxu0 0.0
          %1388 = vmatpush.msra.mxu0 %v441
          %1389 = vmatpush.msra.mxu0 %v440
          %1390 = vmatpush.msra.mxu0 %v439
          %1391 = vmatpush.msra.mxu0 %v438
          %1392 = vmatmul.f32.gmra.mxu0 %v1374
          %v1393 = vpop.f32.mrf.mxu0
          %v1394 = vadd.f32 0.0, %v1393
          %1395 = vdwg.mxu0
          %v1396 = vadd.f32 %v685, %v1394
          %v1397 = vxor.u32 %v1396, 2147483648
          %v1398 = vmul.f32 %v1397, 1.442695
          %v1399 = vpow.pop %v1398
          %v1400 = vadd.f32 %v1399, 1.0
          %v1401 = vrcp.pop %v1400
          %v1402 = vmul.f32 %v1400, %v1401
          %v1403 = vsub.f32 1.0, %v1402
          %v1404 = vmul.f32 %v1401, %v1403
          %v1405 = vadd.f32 %v1401, %v1404
          %vm1406 = vweird.f32 %v1400
          %vm1407 = vweird.f32 %v1401
          %vm1408 = vmor %vm1406, %vm1407
          %v1409 = vsel %vm1408, %v1401, %v1405
          %v1410 = vand.u32 2147483647, %v1400
          %vm1411 = vcmp.eq.f32.partialorder %v1410, 8.507059e+37
          %v1412 = vand.u32 %v1400, 2147483648
          %v1413 = vor.u32 1.1754944e-38, %v1412
          %v1414 = vsel %vm1411, %v1413, %v1409
          %v1415 = vmul.f32 1.0, %v1414
          %v1416 = vtanh.pop %v1396
          %v1417 = vmul.f32 %v1415, %v1364
          %1419 = vrot.lane.b32.xlu0 %v1416, 64
          %v1420 = vpop.permute.xlu0 %1419
          %v1422 = vmul.f32 %v1415, %v1420
          %1424 = vrot.lane.b32.xlu0 %v1422, 32
          %v1425 = vpop.permute.xlu0 %1424
          %v1427 = vadd.f32 %v1417, %v1425
          %v1428 = vtanh.pop %v1427
          %1430 = vrot.lane.b32.xlu0 %v1428, 64
          %v1431 = vpop.permute.xlu0 %1430
          %v1433 = vmul.f32 %v1415, %v1431
          %1435 = vrot.lane.b32.xlu0 %v1433, 32
          %v1436 = vpop.permute.xlu0 %1435
          %v1437 = vsel %vm455, %v1436, 0
          %1439 = vmatpush.msra.mxu0 0.0
          %1440 = vmatpush.msra.mxu0 0.0
          %1441 = vmatpush.msra.mxu0 0.0
          %1442 = vmatpush.msra.mxu0 0.0
          %1443 = vmatpush.msra.mxu0 0.0
          %1444 = vmatpush.msra.mxu0 0.0
          %1445 = vmatpush.msra.mxu0 0.0
          %1446 = vmatpush.msra.mxu0 0.0
          %1447 = vmatpush.msra.mxu0 0.0
          %1448 = vmatpush.msra.mxu0 0.0
          %1449 = vmatpush.msra.mxu0 0.0
          %1450 = vmatpush.msra.mxu0 0.0
          %1451 = vmatpush.msra.mxu0 %v441
          %1452 = vmatpush.msra.mxu0 %v440
          %1453 = vmatpush.msra.mxu0 %v439
          %1454 = vmatpush.msra.mxu0 %v438
          %1455 = vmatmul.f32.gmra.mxu0 %v1437
          %v1456 = vpop.f32.mrf.mxu0
          %v1457 = vadd.f32 0.0, %v1456
          %1458 = vdwg.mxu0
          %v1459 = vadd.f32 %v711, %v1457
          %v1460 = vxor.u32 %v1459, 2147483648
          %v1461 = vmul.f32 %v1460, 1.442695
          %v1462 = vpow.pop %v1461
          %v1463 = vadd.f32 %v1462, 1.0
          %v1464 = vrcp.pop %v1463
          %v1465 = vmul.f32 %v1463, %v1464
          %v1466 = vsub.f32 1.0, %v1465
          %v1467 = vmul.f32 %v1464, %v1466
          %v1468 = vadd.f32 %v1464, %v1467
          %vm1469 = vweird.f32 %v1463
          %vm1470 = vweird.f32 %v1464
          %vm1471 = vmor %vm1469, %vm1470
          %v1472 = vsel %vm1471, %v1464, %v1468
          %v1473 = vand.u32 2147483647, %v1463
          %vm1474 = vcmp.eq.f32.partialorder %v1473, 8.507059e+37
          %v1475 = vand.u32 %v1463, 2147483648
          %v1476 = vor.u32 1.1754944e-38, %v1475
          %v1477 = vsel %vm1474, %v1476, %v1472
          %v1478 = vmul.f32 1.0, %v1477
          %v1479 = vtanh.pop %v1459
          %v1480 = vmul.f32 %v1478, %v1427
          %1482 = vrot.lane.b32.xlu0 %v1479, 64
          %v1483 = vpop.permute.xlu0 %1482
          %v1485 = vmul.f32 %v1478, %v1483
          %1487 = vrot.lane.b32.xlu0 %v1485, 32
          %v1488 = vpop.permute.xlu0 %1487
          %v1490 = vadd.f32 %v1480, %v1488
          %v1491 = vtanh.pop %v1490
          %1493 = vrot.lane.b32.xlu0 %v1491, 64
          %v1494 = vpop.permute.xlu0 %1493
          %v1496 = vmul.f32 %v1478, %v1494
          %v1497 = vtanh.pop %v1496
          %v1498 = vlaneseq
          %v1499 = vshrl.u32 %v1498, 7
          %1501 = vrot.lane.b32.xlu0 %v1496, 32
          %v1502 = vpop.permute.xlu0 %1501
          %v1503 = vsel %vm455, %v1502, 0
          %1505 = vmatpush.msra.mxu0 0.0
          %1506 = vmatpush.msra.mxu0 0.0
          %1507 = vmatpush.msra.mxu0 0.0
          %1508 = vmatpush.msra.mxu0 0.0
          %1509 = vmatpush.msra.mxu0 0.0
          %1510 = vmatpush.msra.mxu0 0.0
          %1511 = vmatpush.msra.mxu0 0.0
          %1512 = vmatpush.msra.mxu0 0.0
          %1513 = vmatpush.msra.mxu0 0.0
          %1514 = vmatpush.msra.mxu0 0.0
          %1515 = vmatpush.msra.mxu0 0.0
          %1516 = vmatpush.msra.mxu0 0.0
          %1517 = vmatpush.msra.mxu0 %v450
          %1518 = vmatpush.msra.mxu0 %v449
          %1519 = vmatpush.msra.mxu0 %v448
          %1520 = vmatpush.msra.mxu0 %v447
          %1521 = vmatmul.f32.gmra.mxu0 %v1503
          %v1522 = vpop.f32.mrf.mxu0
          %v1523 = vadd.f32 0.0, %v1522
          %1524 = vdwg.mxu0
          %v1525 = vadd.f32 %v737, %v1523
          %v1526 = vxor.u32 %v1525, 2147483648
          %v1527 = vmul.f32 %v1526, 1.442695
          %v1528 = vpow.pop %v1527
          %v1529 = vadd.f32 %v1528, 1.0
          %v1530 = vrcp.pop %v1529
          %v1531 = vmul.f32 %v1529, %v1530
          %v1532 = vsub.f32 1.0, %v1531
          %v1533 = vmul.f32 %v1530, %v1532
          %v1534 = vadd.f32 %v1530, %v1533
          %vm1535 = vweird.f32 %v1529
          %vm1536 = vweird.f32 %v1530
          %vm1537 = vmor %vm1535, %vm1536
          %v1538 = vsel %vm1537, %v1530, %v1534
          %v1539 = vand.u32 2147483647, %v1529
          %vm1540 = vcmp.eq.f32.partialorder %v1539, 8.507059e+37
          %v1541 = vand.u32 %v1529, 2147483648
          %v1542 = vor.u32 1.1754944e-38, %v1541
          %v1543 = vsel %vm1540, %v1542, %v1538
          %v1544 = vmul.f32 1.0, %v1543
          %v1545 = vtanh.pop %v1525
          %1547 = vrot.lane.b32.xlu0 %v1497, 64
          %v1548 = vpop.permute.xlu0 %1547
          %v1550 = vmul.f32 %v1544, %v1548
          %1552 = vrot.lane.b32.xlu0 %v1545, 64
          %v1553 = vpop.permute.xlu0 %1552
          %v1555 = vmul.f32 %v1544, %v1553
          %1557 = vrot.lane.b32.xlu0 %v1555, 32
          %v1558 = vpop.permute.xlu0 %1557
          %v1560 = vadd.f32 %v1550, %v1558
          %v1561 = vtanh.pop %v1560
          %1563 = vrot.lane.b32.xlu0 %v1561, 64
          %v1564 = vpop.permute.xlu0 %1563
          %v1566 = vmul.f32 %v1544, %v1564
          %vm1567 = vcmp.eq.s32.totalorder %v1499, 0
          %v1568 = vperm.slane %v1566, 0
          %v1569 = vsel %vm1567, %v1568, 0.0
          %1571 = vrot.lane.b32.xlu0 %v1566, 32
          %v1572 = vpop.permute.xlu0 %1571
          %v1573 = vsel %vm455, %v1572, 0
          %1575 = vmatpush.msra.mxu0 0.0
          %1576 = vmatpush.msra.mxu0 0.0
          %1577 = vmatpush.msra.mxu0 0.0
          %1578 = vmatpush.msra.mxu0 0.0
          %1579 = vmatpush.msra.mxu0 0.0
          %1580 = vmatpush.msra.mxu0 0.0
          %1581 = vmatpush.msra.mxu0 0.0
          %1582 = vmatpush.msra.mxu0 0.0
          %1583 = vmatpush.msra.mxu0 0.0
          %1584 = vmatpush.msra.mxu0 0.0
          %1585 = vmatpush.msra.mxu0 0.0
          %1586 = vmatpush.msra.mxu0 0.0
          %1587 = vmatpush.msra.mxu0 %v450
          %1588 = vmatpush.msra.mxu0 %v449
          %1589 = vmatpush.msra.mxu0 %v448
          %1590 = vmatpush.msra.mxu0 %v447
          %1591 = vmatmul.f32.gmra.mxu0 %v1573
          %v1592 = vpop.f32.mrf.mxu0
          %v1593 = vadd.f32 0.0, %v1592
          %1594 = vdwg.mxu0
          %v1595 = vadd.f32 %v763, %v1593
          %v1596 = vxor.u32 %v1595, 2147483648
          %v1597 = vmul.f32 %v1596, 1.442695
          %v1598 = vpow.pop %v1597
          %v1599 = vadd.f32 %v1598, 1.0
          %v1600 = vrcp.pop %v1599
          %v1601 = vmul.f32 %v1599, %v1600
          %v1602 = vsub.f32 1.0, %v1601
          %v1603 = vmul.f32 %v1600, %v1602
          %v1604 = vadd.f32 %v1600, %v1603
          %vm1605 = vweird.f32 %v1599
          %vm1606 = vweird.f32 %v1600
          %vm1607 = vmor %vm1605, %vm1606
          %v1608 = vsel %vm1607, %v1600, %v1604
          %v1609 = vand.u32 2147483647, %v1599
          %vm1610 = vcmp.eq.f32.partialorder %v1609, 8.507059e+37
          %v1611 = vand.u32 %v1599, 2147483648
          %v1612 = vor.u32 1.1754944e-38, %v1611
          %v1613 = vsel %vm1610, %v1612, %v1608
          %v1614 = vmul.f32 1.0, %v1613
          %v1615 = vtanh.pop %v1595
          %v1616 = vmul.f32 %v1614, %v1560
          %1618 = vrot.lane.b32.xlu0 %v1615, 64
          %v1619 = vpop.permute.xlu0 %1618
          %v1621 = vmul.f32 %v1614, %v1619
          %1623 = vrot.lane.b32.xlu0 %v1621, 32
          %v1624 = vpop.permute.xlu0 %1623
          %v1626 = vadd.f32 %v1616, %v1624
          %v1627 = vtanh.pop %v1626
          %1629 = vrot.lane.b32.xlu0 %v1627, 64
          %v1630 = vpop.permute.xlu0 %1629
          %v1632 = vmul.f32 %v1614, %v1630
          %vm1633 = vcmp.eq.s32.totalorder %v1499, 1
          %v1634 = vperm.slane %v1632, 0
          %v1635 = vsel %vm1633, %v1634, %v1569
          %1637 = vrot.lane.b32.xlu0 %v1632, 32
          %v1638 = vpop.permute.xlu0 %1637
          %v1639 = vsel %vm455, %v1638, 0
          %1641 = vmatpush.msra.mxu0 0.0
          %1642 = vmatpush.msra.mxu0 0.0
          %1643 = vmatpush.msra.mxu0 0.0
          %1644 = vmatpush.msra.mxu0 0.0
          %1645 = vmatpush.msra.mxu0 0.0
          %1646 = vmatpush.msra.mxu0 0.0
          %1647 = vmatpush.msra.mxu0 0.0
          %1648 = vmatpush.msra.mxu0 0.0
          %1649 = vmatpush.msra.mxu0 0.0
          %1650 = vmatpush.msra.mxu0 0.0
          %1651 = vmatpush.msra.mxu0 0.0
          %1652 = vmatpush.msra.mxu0 0.0
          %1653 = vmatpush.msra.mxu0 %v450
          %1654 = vmatpush.msra.mxu0 %v449
          %1655 = vmatpush.msra.mxu0 %v448
          %1656 = vmatpush.msra.mxu0 %v447
          %1657 = vmatmul.f32.gmra.mxu0 %v1639
          %v1658 = vpop.f32.mrf.mxu0
          %v1659 = vadd.f32 0.0, %v1658
          %1660 = vdwg.mxu0
          %v1661 = vadd.f32 %v789, %v1659
          %v1662 = vxor.u32 %v1661, 2147483648
          %v1663 = vmul.f32 %v1662, 1.442695
          %v1664 = vpow.pop %v1663
          %v1665 = vadd.f32 %v1664, 1.0
          %v1666 = vrcp.pop %v1665
          %v1667 = vmul.f32 %v1665, %v1666
          %v1668 = vsub.f32 1.0, %v1667
          %v1669 = vmul.f32 %v1666, %v1668
          %v1670 = vadd.f32 %v1666, %v1669
          %vm1671 = vweird.f32 %v1665
          %vm1672 = vweird.f32 %v1666
          %vm1673 = vmor %vm1671, %vm1672
          %v1674 = vsel %vm1673, %v1666, %v1670
          %v1675 = vand.u32 2147483647, %v1665
          %vm1676 = vcmp.eq.f32.partialorder %v1675, 8.507059e+37
          %v1677 = vand.u32 %v1665, 2147483648
          %v1678 = vor.u32 1.1754944e-38, %v1677
          %v1679 = vsel %vm1676, %v1678, %v1674
          %v1680 = vmul.f32 1.0, %v1679
          %v1681 = vtanh.pop %v1661
          %v1682 = vmul.f32 %v1680, %v1626
          %1684 = vrot.lane.b32.xlu0 %v1681, 64
          %v1685 = vpop.permute.xlu0 %1684
          %v1687 = vmul.f32 %v1680, %v1685
          %1689 = vrot.lane.b32.xlu0 %v1687, 32
          %v1690 = vpop.permute.xlu0 %1689
          %v1692 = vadd.f32 %v1682, %v1690
          %v1693 = vtanh.pop %v1692
          %1695 = vrot.lane.b32.xlu0 %v1693, 64
          %v1696 = vpop.permute.xlu0 %1695
          %v1698 = vmul.f32 %v1680, %v1696
          %vm1699 = vcmp.eq.s32.totalorder %v1499, 2
          %v1700 = vperm.slane %v1698, 0
          %v1701 = vsel %vm1699, %v1700, %v1635
          %1703 = vrot.lane.b32.xlu0 %v1698, 32
          %v1704 = vpop.permute.xlu0 %1703
          %v1705 = vsel %vm455, %v1704, 0
          %1707 = vmatpush.msra.mxu0 0.0
          %1708 = vmatpush.msra.mxu0 0.0
          %1709 = vmatpush.msra.mxu0 0.0
          %1710 = vmatpush.msra.mxu0 0.0
          %1711 = vmatpush.msra.mxu0 0.0
          %1712 = vmatpush.msra.mxu0 0.0
          %1713 = vmatpush.msra.mxu0 0.0
          %1714 = vmatpush.msra.mxu0 0.0
          %1715 = vmatpush.msra.mxu0 0.0
          %1716 = vmatpush.msra.mxu0 0.0
          %1717 = vmatpush.msra.mxu0 0.0
          %1718 = vmatpush.msra.mxu0 0.0
          %1719 = vmatpush.msra.mxu0 %v450
          %1720 = vmatpush.msra.mxu0 %v449
          %1721 = vmatpush.msra.mxu0 %v448
          %1722 = vmatpush.msra.mxu0 %v447
          %1723 = vmatmul.f32.gmra.mxu0 %v1705
          %v1724 = vpop.f32.mrf.mxu0
          %v1725 = vadd.f32 0.0, %v1724
          %1726 = vdwg.mxu0
          %v1727 = vadd.f32 %v815, %v1725
          %v1728 = vxor.u32 %v1727, 2147483648
          %v1729 = vmul.f32 %v1728, 1.442695
          %v1730 = vpow.pop %v1729
          %v1731 = vadd.f32 %v1730, 1.0
          %v1732 = vrcp.pop %v1731
          %v1733 = vmul.f32 %v1731, %v1732
          %v1734 = vsub.f32 1.0, %v1733
          %v1735 = vmul.f32 %v1732, %v1734
          %v1736 = vadd.f32 %v1732, %v1735
          %vm1737 = vweird.f32 %v1731
          %vm1738 = vweird.f32 %v1732
          %vm1739 = vmor %vm1737, %vm1738
          %v1740 = vsel %vm1739, %v1732, %v1736
          %v1741 = vand.u32 2147483647, %v1731
          %vm1742 = vcmp.eq.f32.partialorder %v1741, 8.507059e+37
          %v1743 = vand.u32 %v1731, 2147483648
          %v1744 = vor.u32 1.1754944e-38, %v1743
          %v1745 = vsel %vm1742, %v1744, %v1740
          %v1746 = vmul.f32 1.0, %v1745
          %v1747 = vtanh.pop %v1727
          %v1748 = vmul.f32 %v1746, %v1692
          %1750 = vrot.lane.b32.xlu0 %v1747, 64
          %v1751 = vpop.permute.xlu0 %1750
          %v1753 = vmul.f32 %v1746, %v1751
          %1755 = vrot.lane.b32.xlu0 %v1753, 32
          %v1756 = vpop.permute.xlu0 %1755
          %v1758 = vadd.f32 %v1748, %v1756
          %v1759 = vtanh.pop %v1758
          %1761 = vrot.lane.b32.xlu0 %v1759, 64
          %v1762 = vpop.permute.xlu0 %1761
          %v1764 = vmul.f32 %v1746, %v1762
          %vm1765 = vcmp.eq.s32.totalorder %v1499, 3
          %v1766 = vperm.slane %v1764, 0
          %v1767 = vsel %vm1765, %v1766, %v1701
          %1769 = vrot.lane.b32.xlu0 %v1764, 32
          %v1770 = vpop.permute.xlu0 %1769
          %v1771 = vsel %vm455, %v1770, 0
          %1773 = vmatpush.msra.mxu0 0.0
          %1774 = vmatpush.msra.mxu0 0.0
          %1775 = vmatpush.msra.mxu0 0.0
          %1776 = vmatpush.msra.mxu0 0.0
          %1777 = vmatpush.msra.mxu0 0.0
          %1778 = vmatpush.msra.mxu0 0.0
          %1779 = vmatpush.msra.mxu0 0.0
          %1780 = vmatpush.msra.mxu0 0.0
          %1781 = vmatpush.msra.mxu0 0.0
          %1782 = vmatpush.msra.mxu0 0.0
          %1783 = vmatpush.msra.mxu0 0.0
          %1784 = vmatpush.msra.mxu0 0.0
          %1785 = vmatpush.msra.mxu0 %v450
          %1786 = vmatpush.msra.mxu0 %v449
          %1787 = vmatpush.msra.mxu0 %v448
          %1788 = vmatpush.msra.mxu0 %v447
          %1789 = vmatmul.f32.gmra.mxu0 %v1771
          %v1790 = vpop.f32.mrf.mxu0
          %v1791 = vadd.f32 0.0, %v1790
          %1792 = vdwg.mxu0
          %v1793 = vadd.f32 %v841, %v1791
          %v1794 = vxor.u32 %v1793, 2147483648
          %v1795 = vmul.f32 %v1794, 1.442695
          %v1796 = vpow.pop %v1795
          %v1797 = vadd.f32 %v1796, 1.0
          %v1798 = vrcp.pop %v1797
          %v1799 = vmul.f32 %v1797, %v1798
          %v1800 = vsub.f32 1.0, %v1799
          %v1801 = vmul.f32 %v1798, %v1800
          %v1802 = vadd.f32 %v1798, %v1801
          %vm1803 = vweird.f32 %v1797
          %vm1804 = vweird.f32 %v1798
          %vm1805 = vmor %vm1803, %vm1804
          %v1806 = vsel %vm1805, %v1798, %v1802
          %v1807 = vand.u32 2147483647, %v1797
          %vm1808 = vcmp.eq.f32.partialorder %v1807, 8.507059e+37
          %v1809 = vand.u32 %v1797, 2147483648
          %v1810 = vor.u32 1.1754944e-38, %v1809
          %v1811 = vsel %vm1808, %v1810, %v1806
          %v1812 = vmul.f32 1.0, %v1811
          %v1813 = vtanh.pop %v1793
          %v1814 = vmul.f32 %v1812, %v1758
          %1816 = vrot.lane.b32.xlu0 %v1813, 64
          %v1817 = vpop.permute.xlu0 %1816
          %v1819 = vmul.f32 %v1812, %v1817
          %1821 = vrot.lane.b32.xlu0 %v1819, 32
          %v1822 = vpop.permute.xlu0 %1821
          %v1824 = vadd.f32 %v1814, %v1822
          %v1825 = vtanh.pop %v1824
          %1827 = vrot.lane.b32.xlu0 %v1825, 64
          %v1828 = vpop.permute.xlu0 %1827
          %v1830 = vmul.f32 %v1812, %v1828
          %vm1831 = vcmp.eq.s32.totalorder %v1499, 4
          %v1832 = vperm.slane %v1830, 0
          %v1833 = vsel %vm1831, %v1832, %v1767
          %1835 = vrot.lane.b32.xlu0 %v1830, 32
          %v1836 = vpop.permute.xlu0 %1835
          %v1837 = vsel %vm455, %v1836, 0
          %1839 = vmatpush.msra.mxu0 0.0
          %1840 = vmatpush.msra.mxu0 0.0
          %1841 = vmatpush.msra.mxu0 0.0
          %1842 = vmatpush.msra.mxu0 0.0
          %1843 = vmatpush.msra.mxu0 0.0
          %1844 = vmatpush.msra.mxu0 0.0
          %1845 = vmatpush.msra.mxu0 0.0
          %1846 = vmatpush.msra.mxu0 0.0
          %1847 = vmatpush.msra.mxu0 0.0
          %1848 = vmatpush.msra.mxu0 0.0
          %1849 = vmatpush.msra.mxu0 0.0
          %1850 = vmatpush.msra.mxu0 0.0
          %1851 = vmatpush.msra.mxu0 %v450
          %1852 = vmatpush.msra.mxu0 %v449
          %1853 = vmatpush.msra.mxu0 %v448
          %1854 = vmatpush.msra.mxu0 %v447
          %1855 = vmatmul.f32.gmra.mxu0 %v1837
          %v1856 = vpop.f32.mrf.mxu0
          %v1857 = vadd.f32 0.0, %v1856
          %1858 = vdwg.mxu0
          %v1859 = vadd.f32 %v867, %v1857
          %v1860 = vxor.u32 %v1859, 2147483648
          %v1861 = vmul.f32 %v1860, 1.442695
          %v1862 = vpow.pop %v1861
          %v1863 = vadd.f32 %v1862, 1.0
          %v1864 = vrcp.pop %v1863
          %v1865 = vmul.f32 %v1863, %v1864
          %v1866 = vsub.f32 1.0, %v1865
          %v1867 = vmul.f32 %v1864, %v1866
          %v1868 = vadd.f32 %v1864, %v1867
          %vm1869 = vweird.f32 %v1863
          %vm1870 = vweird.f32 %v1864
          %vm1871 = vmor %vm1869, %vm1870
          %v1872 = vsel %vm1871, %v1864, %v1868
          %v1873 = vand.u32 2147483647, %v1863
          %vm1874 = vcmp.eq.f32.partialorder %v1873, 8.507059e+37
          %v1875 = vand.u32 %v1863, 2147483648
          %v1876 = vor.u32 1.1754944e-38, %v1875
          %v1877 = vsel %vm1874, %v1876, %v1872
          %v1878 = vmul.f32 1.0, %v1877
          %v1879 = vtanh.pop %v1859
          %v1880 = vmul.f32 %v1878, %v1824
          %1882 = vrot.lane.b32.xlu0 %v1879, 64
          %v1883 = vpop.permute.xlu0 %1882
          %v1885 = vmul.f32 %v1878, %v1883
          %1887 = vrot.lane.b32.xlu0 %v1885, 32
          %v1888 = vpop.permute.xlu0 %1887
          %v1890 = vadd.f32 %v1880, %v1888
          %v1891 = vtanh.pop %v1890
          %1893 = vrot.lane.b32.xlu0 %v1891, 64
          %v1894 = vpop.permute.xlu0 %1893
          %v1896 = vmul.f32 %v1878, %v1894
          %vm1897 = vcmp.eq.s32.totalorder %v1499, 5
          %v1898 = vperm.slane %v1896, 0
          %v1899 = vsel %vm1897, %v1898, %v1833
          %1901 = vrot.lane.b32.xlu0 %v1899, 32
          %v1902 = vpop.permute.xlu0 %1901
          %1904 = vst.msk [vmem:[#allocation2] sm:$0xff] %vm455, %v1902
          %vm1905 = vcmask 7168
          %1906 = vst.msk [vmem:[#allocation3] sm:$0xff] %vm1905, -1e+30
          %1907 = vst.msk [vmem:[#allocation4] sm:$0xff] %vm1905, 0.0
          %1908 = vst.msk [vmem:[#allocation5] sm:$0xff] %vm1905, 0.0
        $region105: #{tpu_custom_call.1} parent=96 // pred_fallthru
          _
        %v1909 = vld [vmem:[#allocation2] sm:$0xff]
        %v1910 = vpack.c.bf16 %v1909, %v1909
        %v1911 = vld [vmem:[%s393] sm:$0xf]
        %v1912 = vld [vmem:[%s393 + $0x4] sm:$0xf]
        %v1913 = vld [vmem:[%s393 + $0x8] sm:$0xf]
        %v1914 = vld [vmem:[%s393 + $0xc] sm:$0xf]
        %v1915 = vld [vmem:[%s428] sm:$0x1]
        %v1917 = vperm.slane %v1915, 0
        %v1923 = vunpack.c.l.b16 %v1911
        %v1924 = vunpack.c.l.b16 %v1912
        %v1925 = vunpack.c.l.b16 %v1913
        %v1926 = vunpack.c.l.b16 %v1914
        %v1927 = vpack.c.b16 %v1924, %v1923
        %v1928 = vpack.c.b16 %v1926, %v1925
        %vm1931 = vcmask 261120
        %v1933 = vsel %vm1931, %v1910, 0
        %1935 = vmatpush.bf16.msra.mxu0 0
        %1936 = vmatpush.bf16.msra.mxu0 0
        %1937 = vmatpush.bf16.msra.mxu0 0
        %1938 = vmatpush.bf16.msra.mxu0 0
        %1939 = vmatpush.bf16.msra.mxu0 0
        %1940 = vmatpush.bf16.msra.mxu0 0
        %1941 = vmatpush.bf16.msra.mxu0 %v1928
        %1942 = vmatpush.bf16.msra.mxu0 %v1927
        %1943 = vmatmul.bf16.gmra.mxu0 %v1933
        %v1944 = vpop.f32.mrf.mxu0
        %v1945 = vadd.f32 %v1917, %v1944
        %v1946 = vpop.f32.mrf.mxu0
        %1947 = vdwg.mxu0
        %v1948 = vld [vmem:[#allocation3] sm:$0xff]
        %1949 = vmax.xlane.f32.xlu0 %v1945
        %v1950 = vpop.xlane.xlu0 %1949
        %v1951 = vmax.f32 %v1948, %v1950
        %v1952 = vsub.f32 %v1948, %v1951
        %v1953 = vmul.f32 %v1952, 1.442695
        %v1954 = vpow.pop %v1953
        %v1955 = vld [vmem:[#allocation4] sm:$0xff]
        %v1956 = vmul.f32 %v1954, %v1955
        %1958 = vset.pattern.permute.xlu0 0
        %1959 = vperm.xlu0 %1958, %v1951
        %v1960 = vpop.permute.xlu0 %1959
        %v1962 = vsub.f32 %v1945, %v1960
        %v1963 = vmul.f32 %v1962, 1.442695
        %v1964 = vpow.pop %v1963
        %1965 = vadd.xlane.f32.xlu0 %v1964
        %v1966 = vpop.xlane.xlu0 %1965
        %v1967 = vadd.f32 %v1956, %v1966
        %vm1968 = vcmask 7168
        %1969 = vst.msk [vmem:[#allocation4] sm:$0xff] %vm1968, %v1967
        %1970 = vst.msk [vmem:[#allocation3] sm:$0xff] %vm1968, %v1951
        %v1971 = vlaneseq
        %v1972 = vshrl.u32 %v1971, 7
        %vm1973 = vcmp.eq.s32.totalorder %v1972, 0
        %s1974 = sld [smem:[#allocation8]]
        %v1975 = vstv %s1974
        %v1976 = vsel %vm1973, %v1975, 4294967295
        %vm1977 = vcmp.eq.s32.totalorder %v1972, 1
        %s1978 = sld [smem:[#allocation8 + $0x1]]
        %v1979 = vstv %s1978
        %v1980 = vsel %vm1977, %v1979, %v1976
        %vm1981 = vcmp.eq.s32.totalorder %v1972, 2
        %s1982 = sld [smem:[#allocation8 + $0x2]]
        %v1983 = vstv %s1982
        %v1984 = vsel %vm1981, %v1983, %v1980
        %vm1985 = vcmp.eq.s32.totalorder %v1972, 3
        %s1986 = sld [smem:[#allocation8 + $0x3]]
        %v1987 = vstv %s1986
        %v1988 = vsel %vm1985, %v1987, %v1984
        %vm1989 = vcmp.eq.s32.totalorder %v1972, 4
        %s1990 = sld [smem:[#allocation8 + $0x4]]
        %v1991 = vstv %s1990
        %v1992 = vsel %vm1989, %v1991, %v1988
        %vm1993 = vcmp.eq.s32.totalorder %v1972, 5
        %s1994 = sld [smem:[#allocation8 + $0x5]]
        %v1995 = vstv %s1994
        %v1996 = vsel %vm1993, %v1995, %v1992
        %v1997 = vlaneseq
        %v1998 = vand.u32 %v1997, 127
        %s1999 = smul.u32 %s36, 128
        %v2000 = vstv %s1999
        %v2001 = vsub.s32 %v1996, %v2000
        %vm2002 = vcmp.eq.s32.totalorder %v1998, %v2001
        %v2003 = vld [vmem:[#allocation5] sm:$0xff]
        %v2004 = vsel %vm2002, %v1945, 0.0
        %2005 = vadd.xlane.f32.xlu0 %v2004
        %v2006 = vpop.xlane.xlu0 %2005
        %v2007 = vadd.f32 %v2003, %v2006
        %2008 = vst.msk [vmem:[#allocation5] sm:$0xff] %vm1968, %v2007
        %p2009 = scmp.eq.s32.totalorder %s36, 1
        // Predicated region
        $region106: #{tpu_custom_call.1} parent=96 // pred_check
          %p2010 = pneg %p2009
        $region107: #{tpu_custom_call.1} parent=96 // pred_check_branch
          %2012 = sbr.rel (%p2010) target = $region109
        $region108: #{tpu_custom_call.1} parent=96 // pred_region
          %v2013 = vld [vmem:[#allocation3] sm:$0xff]
          %v2014 = vld [vmem:[#allocation4] sm:$0xff]
          %v2015 = vlog2.pop %v2014
          %v2016 = vmul.f32 %v2015, 0.6931472
          %v2017 = vadd.f32 %v2013, %v2016
          %v2018 = vld [vmem:[#allocation5] sm:$0xff]
          %v2019 = vsub.f32 %v2017, %v2018
          %2020 = vst.msk [vmem:[%s12] sm:$0xff] %vm1968, %v2019
        $region109: #{tpu_custom_call.1} parent=96 // pred_fallthru
          _
        // Predicated region
        $region110: #{tpu_custom_call.1} parent=96 // pred_check
          %p2021 = pneg %p269
        $region111: #{tpu_custom_call.1} parent=96 // pred_check_branch
          %2023 = sbr.rel (%p2021) target = $region113
        $region112: #{tpu_custom_call.1} parent=96 // pred_region
          _
        $region113: #{tpu_custom_call.1} parent=96 // pred_fallthru
          _
        // Predicated region
        $region114: #{tpu_custom_call.1} parent=96 // pred_check
          %p2024 = pneg %p269
        $region115: #{tpu_custom_call.1} parent=96 // pred_check_branch
          %2026 = sbr.rel (%p2024) target = $region117
        $region116: #{tpu_custom_call.1} parent=96 // pred_region
          _
        $region117: #{tpu_custom_call.1} parent=96 // pred_fallthru
          _
      $region97: #{tpu_custom_call.1} parent=5 // pred_fallthru
        _
      %p2027 = scmp.le.s32.totalorder 2, %s31
      // Predicated region
      $region118: #{tpu_custom_call.1} parent=5 // pred_check
        %p2028 = pneg %p2027
      $region119: #{tpu_custom_call.1} parent=5 // pred_check_branch
        %2030 = sbr.rel (%p2028) target = $region121
      $region120: #{tpu_custom_call.1} parent=5 // pred_region
        %s2031 = ssub.s32 %s31, 2
      $region121: #{tpu_custom_call.1} parent=5 // pred_fallthru
        _
    $region6: #{tpu_custom_call.1} parent=1 // loop_footer
      %s35 = sadd.s32 1, %s31
    $region7: #{tpu_custom_call.1} parent=1 // loop_footer_branch
      %30 = sbr.rel target = $region3
    $region8: #{tpu_custom_call.1} parent=1 // loop_exit
      _

</llo_original>
